<compile_context>
chip_gen: v6e
topology: v6e:2x2x1
jax: 0.10.0
libtpu: 0.0.40
codegen_flags: <defaults>
</compile_context>

<pallas_src>
import functools

import jax
import jax.numpy as jnp
from jax.experimental import pallas as pl
from jax.experimental.pallas import tpu as pltpu

# ---------------- scaled-down config (small shapes, deterministic synthetic weights) ----------
B        = 2
C_IN     = 1                         # single-channel log-mel spectrogram
H, W     = 32, 32                    # (mel bins, time frames)
PATCH    = 4                         # patchify-conv kernel == stride
N_T      = H // PATCH                # 8
N_F      = W // PATCH                # 8
N_TOK    = N_T * N_F                 # 64 spatial positions of the feature map
C_COORD  = C_IN + 2                  # CoordConv appends 2 channels
FEAT0    = C_COORD * PATCH * PATCH   # 48 im2col features per patch
FEAT_PAD = 64                        # zero-padded feature dim (tidy sublane multiple)
C0, C1, C2, C3 = 64, 128, 256, 512   # backbone channel progression (resnet18-like)
OUT_DIM  = 128                       # nn.Linear(512, out_dim) -> lane-dense output
M_ROWS   = B * N_TOK                 # 128 token rows: batch folded into the matmul M dim


# ---------------- fused Pallas kernel (single program, everything VMEM-resident) --------------
def _spec_encoder_kernel(tok_ref,
                         w_stem, w_r1, w_r2, w_p1, w_p2, w_p3, w_fc,
                         bias_ref,
                         o_ref):
    """CoordConv'd + patchified tokens -> conv backbone -> global avg pool -> fc, all in VMEM."""
    x = tok_ref[...]                                                    # (M_ROWS, FEAT_PAD) f32

    def mm(a, w_ref, row, cols):
        # Cast activations to bf16 only at the MXU input (v5e has no bf16 VALU path);
        # accumulate in f32 and do the bias add / ReLU / residual math in f32 on the VPU.
        return (jnp.dot(a.astype(jnp.bfloat16), w_ref[...],
                        preferred_element_type=jnp.float32)
                + bias_ref[row:row + 1, :cols])

    relu = lambda t: jnp.maximum(t, 0.0)

    # --- stem: Conv2d(3, 64, kernel=4, stride=4) as im2col matmul + ReLU ---
    h = relu(mm(x, w_stem, 0, C0))                                      # (M_ROWS, 64)

    # --- residual basic block (1x1 convs, BN folded) ---
    r = relu(mm(h, w_r1, 1, C0))
    r = mm(r, w_r2, 2, C0)
    h = relu(h + r)                                                     # (M_ROWS, 64)

    # --- channel-expansion stages (1x1 convs + ReLU): 64 -> 128 -> 256 -> 512 ---
    h = relu(mm(h, w_p1, 3, C1))                                        # (M_ROWS, 128)
    h = relu(mm(h, w_p2, 4, C2))                                        # (M_ROWS, 256)
    h = relu(mm(h, w_p3, 5, C3))                                        # (M_ROWS, 512)

    # --- AdaptiveAvgPool2d((1,1)) + flatten(1): per-batch pool over N_TOK positions.
    #     The 1/N_TOK scale is folded into w_fc, so a plain sum suffices here. ---
    pooled = jnp.sum(h.reshape(B, N_TOK, C3), axis=1)                   # (B, 512)

    # --- nn.Linear(512, OUT_DIM) ---
    o_ref[...] = (jnp.dot(pooled.astype(jnp.bfloat16), w_fc[...],
                          preferred_element_type=jnp.float32)
                  + bias_ref[6:7, :OUT_DIM]).astype(o_ref.dtype)        # lane-dense (B, 128)


# ---------------- wrapper: CoordConv + space-to-depth patchify (pure layout), then one call ----
def _coordconv_patchify(log_spec):
    """CoordConv (exact PyTorch semantics) + 4x4/s4 im2col as a single vectorized layout op."""
    Bb = log_spec.shape[0]
    lin_h = jnp.linspace(-1.0, 1.0, H, dtype=jnp.float32)[:, None] * jnp.ones((1, W), jnp.float32)
    lin_w = jnp.ones((H, 1), jnp.float32) * jnp.linspace(-1.0, 1.0, W, dtype=jnp.float32)[None, :]
    coords = jnp.broadcast_to(jnp.stack([lin_h, lin_w], axis=0)[None], (Bb, 2, H, W))
    x = jnp.concatenate([log_spec, coords], axis=1)                     # (B, 3, H, W)
    # im2col feature order (C, kh, kw) matches PyTorch conv weight.reshape(C_out, -1).T
    x = x.reshape(Bb, C_COORD, N_T, PATCH, N_F, PATCH)
    x = x.transpose(0, 2, 4, 1, 3, 5)                                   # (B, hP, wP, C, kh, kw)
    x = x.reshape(Bb, N_TOK, FEAT0)                                     # (B, 64, 48)
    # zero-pad features 48 -> 64 and fold batch into the matmul M dimension
    x = jnp.pad(x, ((0, 0), (0, 0), (0, FEAT_PAD - FEAT0)))
    return x.reshape(Bb * N_TOK, FEAT_PAD)                              # (128, 64)


def spec_encoder_forward(log_spec, params):
    """log_spec: (B, 1, H, W) float32 log-mel spectrogram."""
    assert log_spec.shape == (B, C_IN, H, W), log_spec.shape
    tok = _coordconv_patchify(log_spec)                                 # (M_ROWS, FEAT_PAD) f32

    # Kernel-operand prep (tiny, folded by XLA at trace time):
    #   * weights to bf16 (halves the dominant HBM->VMEM weight traffic, MXU-native width)
    #   * w_stem rows zero-padded 48 -> 64 to match padded tokens
    #   * 1/N_TOK pooling scale folded into w_fc (kernel pools with a sum)
    #   * all 7 biases packed into ONE (8, 512) f32 slab -> 9 pallas_call inputs instead of 15
    w_stem = jnp.pad(params['w_stem'],
                     ((0, FEAT_PAD - FEAT0), (0, 0))).astype(jnp.bfloat16)
    w_r1 = params['w_r1'].astype(jnp.bfloat16)
    w_r2 = params['w_r2'].astype(jnp.bfloat16)
    w_p1 = params['w_p1'].astype(jnp.bfloat16)
    w_p2 = params['w_p2'].astype(jnp.bfloat16)
    w_p3 = params['w_p3'].astype(jnp.bfloat16)
    w_fc = (params['w_fc'] * (1.0 / N_TOK)).astype(jnp.bfloat16)

    bias_pack = jnp.zeros((8, 512), jnp.float32)
    for row, (name, cols) in enumerate([('b_stem', C0), ('b_r1', C0), ('b_r2', C0),
                                        ('b_p1', C1), ('b_p2', C2), ('b_p3', C3),
                                        ('b_fc', OUT_DIM)]):
        bias_pack = bias_pack.at[row, :cols].set(params[name].reshape(-1))

    operands = (tok, w_stem, w_r1, w_r2, w_p1, w_p2, w_p3, w_fc, bias_pack)

    flops = (2 * M_ROWS * (FEAT_PAD * C0 + 2 * C0 * C0 + C0 * C1 + C1 * C2 + C2 * C3)
             + 2 * B * C3 * OUT_DIM)
    bytes_accessed = (tok.size * 4 + bias_pack.size * 4 + B * OUT_DIM * 4
                      + 2 * sum(int(w.size) for w in operands[1:8]))    # bf16 weights

    vmem_spec = pl.BlockSpec(memory_space=pltpu.MemorySpace.VMEM)
    return pl.pallas_call(
        _spec_encoder_kernel,
        out_shape=jax.ShapeDtypeStruct((B, OUT_DIM), jnp.float32),
        in_specs=[vmem_spec] * len(operands),
        out_specs=vmem_spec,
        cost_estimate=pl.CostEstimate(flops=flops, transcendentals=0,
                                      bytes_accessed=bytes_accessed),
    )(*operands)


# ---------------- parameters (deterministic synthetic init) ------------------------------------
def init_params(key):
    ks = iter(jax.random.split(key, 16))

    def nrm(shape, scale=0.02):
        return (scale * jax.random.normal(next(ks), shape)).astype(jnp.float32)

    return {
        # Conv2d(3, 64, 4, stride=4) weight as (C_in*kH*kW, C_out) = weight.reshape(C_out,-1).T
        'w_stem': nrm((FEAT0, C0)), 'b_stem': nrm((C0,)),
        # residual 1x1 basic block @ 64 channels
        'w_r1': nrm((C0, C0)), 'b_r1': nrm((C0,)),
        'w_r2': nrm((C0, C0)), 'b_r2': nrm((C0,)),
        # 1x1 channel-expansion convs 64 -> 128 -> 256 -> 512
        'w_p1': nrm((C0, C1)), 'b_p1': nrm((C1,)),
        'w_p2': nrm((C1, C2)), 'b_p2': nrm((C2,)),
        'w_p3': nrm((C2, C3)), 'b_p3': nrm((C3,)),
        # nn.Linear(512, OUT_DIM)
        'w_fc': nrm((C3, OUT_DIM)), 'b_fc': nrm((OUT_DIM,)),
    }


# ---------------- main --------------------------------------------------------------------------
if __name__ == "__main__":
    key = jax.random.PRNGKey(0)
    pkey, xkey = jax.random.split(key)
    params = init_params(pkey)

    # stand-in for the log-mel spectrogram input of Spec_Encoder.forward
    log_spec = jax.random.normal(xkey, (B, C_IN, H, W), jnp.float32)

    fwd = jax.jit(functools.partial(spec_encoder_forward, params=params))
    out = fwd(log_spec)
    jax.block_until_ready(out)

    assert out.shape == (B, OUT_DIM), out.shape
    assert out.dtype == jnp.float32
    assert bool(jnp.all(jnp.isfinite(out)))
    print("KERNEL_OK")
</pallas_src>

<mosaic_0001>
module attributes {stable_mosaic.version = 11 : i64} {
  func.func @_spec_encoder_kernel(%arg0: memref<128x64xf32, #tpu.memory_space<vmem>>, %arg1: memref<64x64xbf16, #tpu.memory_space<vmem>>, %arg2: memref<64x64xbf16, #tpu.memory_space<vmem>>, %arg3: memref<64x64xbf16, #tpu.memory_space<vmem>>, %arg4: memref<64x128xbf16, #tpu.memory_space<vmem>>, %arg5: memref<128x256xbf16, #tpu.memory_space<vmem>>, %arg6: memref<256x512xbf16, #tpu.memory_space<vmem>>, %arg7: memref<512x128xbf16, #tpu.memory_space<vmem>>, %arg8: memref<8x512xf32, #tpu.memory_space<vmem>>, %arg9: memref<2x128xf32, #tpu.memory_space<vmem>>) attributes {dimension_semantics = [], scalar_prefetch = 0 : i64, scratch_operands = 0 : i64, tpu.core_type = #tpu.core_type<tc>} {
    %c0 = arith.constant 0 : index
    %c0_0 = arith.constant 0 : index
    %0 = vector.load %arg0[%c0, %c0_0] : memref<128x64xf32, #tpu.memory_space<vmem>>, vector<128x64xf32>
    %1 = arith.truncf %0 : vector<128x64xf32> to vector<128x64xbf16>
    %c0_1 = arith.constant 0 : index
    %c0_2 = arith.constant 0 : index
    %2 = vector.load %arg1[%c0_1, %c0_2] : memref<64x64xbf16, #tpu.memory_space<vmem>>, vector<64x64xbf16>
    %cst = arith.constant dense<0.000000e+00> : vector<128x64xf32>
    %3 = tpu.matmul %1, %2, %cst {dimension_numbers = #tpu.dot_dimension_numbers<[1], [0], [0], [1], [0, 0, 1, 1], [], []>} : vector<128x64xbf16>, vector<64x64xbf16>, vector<128x64xf32> -> vector<128x64xf32>
    %c0_3 = arith.constant 0 : index
    %c0_4 = arith.constant 0 : index
    %4 = vector.load %arg8[%c0_3, %c0_4] : memref<8x512xf32, #tpu.memory_space<vmem>>, vector<1x64xf32>
    %5 = vector.broadcast %4 : vector<1x64xf32> to vector<128x64xf32>
    %6 = arith.addf %3, %5 : vector<128x64xf32>
    %cst_5 = arith.constant 0.000000e+00 : f32
    %7 = vector.broadcast %cst_5 : f32 to vector<128x64xf32>
    %8 = arith.maximumf %6, %7 : vector<128x64xf32>
    %9 = arith.truncf %8 : vector<128x64xf32> to vector<128x64xbf16>
    %c0_6 = arith.constant 0 : index
    %c0_7 = arith.constant 0 : index
    %10 = vector.load %arg2[%c0_6, %c0_7] : memref<64x64xbf16, #tpu.memory_space<vmem>>, vector<64x64xbf16>
    %cst_8 = arith.constant dense<0.000000e+00> : vector<128x64xf32>
    %11 = tpu.matmul %9, %10, %cst_8 {dimension_numbers = #tpu.dot_dimension_numbers<[1], [0], [0], [1], [0, 0, 1, 1], [], []>} : vector<128x64xbf16>, vector<64x64xbf16>, vector<128x64xf32> -> vector<128x64xf32>
    %c1 = arith.constant 1 : index
    %c0_9 = arith.constant 0 : index
    %12 = vector.load %arg8[%c1, %c0_9] : memref<8x512xf32, #tpu.memory_space<vmem>>, vector<1x64xf32>
    %13 = vector.broadcast %12 : vector<1x64xf32> to vector<128x64xf32>
    %14 = arith.addf %11, %13 : vector<128x64xf32>
    %cst_10 = arith.constant 0.000000e+00 : f32
    %15 = vector.broadcast %cst_10 : f32 to vector<128x64xf32>
    %16 = arith.maximumf %14, %15 : vector<128x64xf32>
    %17 = arith.truncf %16 : vector<128x64xf32> to vector<128x64xbf16>
    %c0_11 = arith.constant 0 : index
    %c0_12 = arith.constant 0 : index
    %18 = vector.load %arg3[%c0_11, %c0_12] : memref<64x64xbf16, #tpu.memory_space<vmem>>, vector<64x64xbf16>
    %cst_13 = arith.constant dense<0.000000e+00> : vector<128x64xf32>
    %19 = tpu.matmul %17, %18, %cst_13 {dimension_numbers = #tpu.dot_dimension_numbers<[1], [0], [0], [1], [0, 0, 1, 1], [], []>} : vector<128x64xbf16>, vector<64x64xbf16>, vector<128x64xf32> -> vector<128x64xf32>
    %c2 = arith.constant 2 : index
    %c0_14 = arith.constant 0 : index
    %20 = vector.load %arg8[%c2, %c0_14] : memref<8x512xf32, #tpu.memory_space<vmem>>, vector<1x64xf32>
    %21 = vector.broadcast %20 : vector<1x64xf32> to vector<128x64xf32>
    %22 = arith.addf %19, %21 : vector<128x64xf32>
    %23 = arith.addf %8, %22 : vector<128x64xf32>
    %cst_15 = arith.constant 0.000000e+00 : f32
    %24 = vector.broadcast %cst_15 : f32 to vector<128x64xf32>
    %25 = arith.maximumf %23, %24 : vector<128x64xf32>
    %26 = arith.truncf %25 : vector<128x64xf32> to vector<128x64xbf16>
    %c0_16 = arith.constant 0 : index
    %c0_17 = arith.constant 0 : index
    %27 = vector.load %arg4[%c0_16, %c0_17] : memref<64x128xbf16, #tpu.memory_space<vmem>>, vector<64x128xbf16>
    %cst_18 = arith.constant dense<0.000000e+00> : vector<128x128xf32>
    %28 = tpu.matmul %26, %27, %cst_18 {dimension_numbers = #tpu.dot_dimension_numbers<[1], [0], [0], [1], [0, 0, 1, 1], [], []>} : vector<128x64xbf16>, vector<64x128xbf16>, vector<128x128xf32> -> vector<128x128xf32>
    %c3 = arith.constant 3 : index
    %c0_19 = arith.constant 0 : index
    %29 = vector.load %arg8[%c3, %c0_19] : memref<8x512xf32, #tpu.memory_space<vmem>>, vector<1x128xf32>
    %30 = vector.broadcast %29 : vector<1x128xf32> to vector<128x128xf32>
    %31 = arith.addf %28, %30 : vector<128x128xf32>
    %cst_20 = arith.constant 0.000000e+00 : f32
    %32 = vector.broadcast %cst_20 : f32 to vector<128x128xf32>
    %33 = arith.maximumf %31, %32 : vector<128x128xf32>
    %34 = arith.truncf %33 : vector<128x128xf32> to vector<128x128xbf16>
    %c0_21 = arith.constant 0 : index
    %c0_22 = arith.constant 0 : index
    %35 = vector.load %arg5[%c0_21, %c0_22] : memref<128x256xbf16, #tpu.memory_space<vmem>>, vector<128x256xbf16>
    %cst_23 = arith.constant dense<0.000000e+00> : vector<128x256xf32>
    %36 = tpu.matmul %34, %35, %cst_23 {dimension_numbers = #tpu.dot_dimension_numbers<[1], [0], [0], [1], [0, 0, 1, 1], [], []>} : vector<128x128xbf16>, vector<128x256xbf16>, vector<128x256xf32> -> vector<128x256xf32>
    %c4 = arith.constant 4 : index
    %c0_24 = arith.constant 0 : index
    %37 = vector.load %arg8[%c4, %c0_24] : memref<8x512xf32, #tpu.memory_space<vmem>>, vector<1x256xf32>
    %38 = vector.broadcast %37 : vector<1x256xf32> to vector<128x256xf32>
    %39 = arith.addf %36, %38 : vector<128x256xf32>
    %cst_25 = arith.constant 0.000000e+00 : f32
    %40 = vector.broadcast %cst_25 : f32 to vector<128x256xf32>
    %41 = arith.maximumf %39, %40 : vector<128x256xf32>
    %42 = arith.truncf %41 : vector<128x256xf32> to vector<128x256xbf16>
    %c0_26 = arith.constant 0 : index
    %c0_27 = arith.constant 0 : index
    %43 = vector.load %arg6[%c0_26, %c0_27] : memref<256x512xbf16, #tpu.memory_space<vmem>>, vector<256x512xbf16>
    %cst_28 = arith.constant dense<0.000000e+00> : vector<128x512xf32>
    %44 = tpu.matmul %42, %43, %cst_28 {dimension_numbers = #tpu.dot_dimension_numbers<[1], [0], [0], [1], [0, 0, 1, 1], [], []>} : vector<128x256xbf16>, vector<256x512xbf16>, vector<128x512xf32> -> vector<128x512xf32>
    %c5 = arith.constant 5 : index
    %c0_29 = arith.constant 0 : index
    %45 = vector.load %arg8[%c5, %c0_29] : memref<8x512xf32, #tpu.memory_space<vmem>>, vector<1x512xf32>
    %46 = vector.broadcast %45 : vector<1x512xf32> to vector<128x512xf32>
    %47 = arith.addf %44, %46 : vector<128x512xf32>
    %cst_30 = arith.constant 0.000000e+00 : f32
    %48 = vector.broadcast %cst_30 : f32 to vector<128x512xf32>
    %49 = arith.maximumf %47, %48 : vector<128x512xf32>
    %50 = vector.shape_cast %49 : vector<128x512xf32> to vector<2x64x512xf32>
    %cst_31 = arith.constant dense<0.000000e+00> : vector<2x512xf32>
    %51 = vector.multi_reduction <add>, %50, %cst_31 [1] : vector<2x64x512xf32> to vector<2x512xf32>
    %52 = arith.truncf %51 : vector<2x512xf32> to vector<2x512xbf16>
    %c0_32 = arith.constant 0 : index
    %c0_33 = arith.constant 0 : index
    %53 = vector.load %arg7[%c0_32, %c0_33] : memref<512x128xbf16, #tpu.memory_space<vmem>>, vector<512x128xbf16>
    %cst_34 = arith.constant dense<0.000000e+00> : vector<2x128xf32>
    %54 = tpu.matmul %52, %53, %cst_34 {dimension_numbers = #tpu.dot_dimension_numbers<[1], [0], [0], [1], [0, 0, 1, 1], [], []>} : vector<2x512xbf16>, vector<512x128xbf16>, vector<2x128xf32> -> vector<2x128xf32>
    %c6 = arith.constant 6 : index
    %c0_35 = arith.constant 0 : index
    %55 = vector.load %arg8[%c6, %c0_35] : memref<8x512xf32, #tpu.memory_space<vmem>>, vector<1x128xf32>
    %56 = vector.broadcast %55 : vector<1x128xf32> to vector<2x128xf32>
    %57 = arith.addf %54, %56 : vector<2x128xf32>
    %c0_36 = arith.constant 0 : index
    %c0_37 = arith.constant 0 : index
    %58 = vector.load %arg9[%c0_36, %c0_37] : memref<2x128xf32, #tpu.memory_space<vmem>>, vector<2x128xf32>
    tpu.vector_store %arg9[%c0_36, %c0_37], %57 {strides = array<i32>} : memref<2x128xf32, #tpu.memory_space<vmem>>, vector<2x128xf32>,
    return
  }
}

</mosaic_0001>

<llo_original>
// kernel: spec_encoder_forward.1
$region0: #{spec_encoder_forward.1}
  #allocation0 [shape = 'u32[]', space=smem, size = 0x4, offset = 0x4, fixed_abs, tag = 'smem constant byte address 0x4 - core index']
  #allocation1 [shape = 'u32[144,128]{1,0:T(1,128)}', space=vmem, size = 0x12000, scoped, tag = 'internal scratch']
  %s0 = inlined_call_operand.vmem [shape: f32[128,64], index: 0, kind: input, shape index: {}]
  %s1 = inlined_call_operand.vmem [shape: bf16[64,64], index: 1, kind: input, shape index: {}]
  %s2 = inlined_call_operand.vmem [shape: bf16[64,64], index: 2, kind: input, shape index: {}]
  %s3 = inlined_call_operand.vmem [shape: bf16[64,64], index: 3, kind: input, shape index: {}]
  %s4 = inlined_call_operand.vmem [shape: bf16[64,128], index: 4, kind: input, shape index: {}]
  %s5 = inlined_call_operand.vmem [shape: bf16[128,256], index: 5, kind: input, shape index: {}]
  %s6 = inlined_call_operand.vmem [shape: bf16[256,512], index: 6, kind: input, shape index: {}]
  %s7 = inlined_call_operand.vmem [shape: bf16[512,128], index: 7, kind: input, shape index: {}]
  %s8 = inlined_call_operand.vmem [shape: f32[8,512], index: 8, kind: input, shape index: {}]
  %s9 = inlined_call_operand.hbm [shape: f32[2,128], index: 9, kind: output, shape index: {}]
  %s10 = sld [smem:[#allocation0]]
  $region46: #{spec_encoder_forward.1} parent=0
    _
  %s12 = ssub.s32 1, %s10
  %s13 = scalar_select 0, %s12, %s10
  $region1: #{spec_encoder_forward.1} parent=0
    #allocation2 [shape = 'u8[1024]{0}', space=vmem, size = 0x400, scoped, tag = 'output window, operand 0, single buffered']
    #allocation3 [shape = 's32[1]{0}', space=sflag, size = 0x4, scoped, tag = 'scoped memory for spec_encoder_forward.1']
    %14 = vsyncpa [#allocation3], 0
    // Predicated region
    $region2: #{spec_encoder_forward.1} parent=1 // pred_check
      _
    $region3: #{spec_encoder_forward.1} parent=1 // pred_check_branch
      %16 = sbr.rel (0) target = $region5
    $region4: #{spec_encoder_forward.1} parent=1 // pred_region
      _
    $region5: #{spec_encoder_forward.1} parent=1 // pred_fallthru
      _
    // Predicated region
    $region6: #{spec_encoder_forward.1} parent=1 // pred_check
      _
    $region7: #{spec_encoder_forward.1} parent=1 // pred_check_branch
      %18 = sbr.rel (0) target = $region9
    $region8: #{spec_encoder_forward.1} parent=1 // pred_region
      _
    $region9: #{spec_encoder_forward.1} parent=1 // pred_fallthru
      _
    // Predicated region
    $region10: #{spec_encoder_forward.1} parent=1 // pred_check
      _
    $region11: #{spec_encoder_forward.1} parent=1 // pred_check_branch
      %20 = sbr.rel (0) target = $region13
    $region12: #{spec_encoder_forward.1} parent=1 // pred_region
      _
    $region13: #{spec_encoder_forward.1} parent=1 // pred_fallthru
      _
    // Predicated region
    $region14: #{spec_encoder_forward.1} parent=1 // pred_check
      _
    $region15: #{spec_encoder_forward.1} parent=1 // pred_check_branch
      %22 = sbr.rel (0) target = $region17
    $region16: #{spec_encoder_forward.1} parent=1 // pred_region
      _
    $region17: #{spec_encoder_forward.1} parent=1 // pred_fallthru
      _
    // Predicated region
    $region18: #{spec_encoder_forward.1} parent=1 // pred_check
      _
    $region19: #{spec_encoder_forward.1} parent=1 // pred_check_branch
      %24 = sbr.rel (0) target = $region21
    $region20: #{spec_encoder_forward.1} parent=1 // pred_region
      _
    $region21: #{spec_encoder_forward.1} parent=1 // pred_fallthru
      _
    // Predicated region
    $region22: #{spec_encoder_forward.1} parent=1 // pred_check
      _
    $region23: #{spec_encoder_forward.1} parent=1 // pred_check_branch
      %26 = sbr.rel (0) target = $region25
    $region24: #{spec_encoder_forward.1} parent=1 // pred_region
      _
    $region25: #{spec_encoder_forward.1} parent=1 // pred_fallthru
      _
    // Predicated region
    $region26: #{spec_encoder_forward.1} parent=1 // pred_check
      _
    $region27: #{spec_encoder_forward.1} parent=1 // pred_check_branch
      %28 = sbr.rel (0) target = $region29
    $region28: #{spec_encoder_forward.1} parent=1 // pred_region
      _
    $region29: #{spec_encoder_forward.1} parent=1 // pred_fallthru
      _
    // Predicated region
    $region30: #{spec_encoder_forward.1} parent=1 // pred_check
      _
    $region31: #{spec_encoder_forward.1} parent=1 // pred_check_branch
      %30 = sbr.rel (0) target = $region33
    $region32: #{spec_encoder_forward.1} parent=1 // pred_region
      _
    $region33: #{spec_encoder_forward.1} parent=1 // pred_fallthru
      _
    // Predicated region
    $region34: #{spec_encoder_forward.1} parent=1 // pred_check
      _
    $region35: #{spec_encoder_forward.1} parent=1 // pred_check_branch
      %32 = sbr.rel (0) target = $region37
    $region36: #{spec_encoder_forward.1} parent=1 // pred_region
      _
    $region37: #{spec_encoder_forward.1} parent=1 // pred_fallthru
      _
    %v34 = vld [vmem:[%s0] sm:$0xff]
    %v35 = vld [vmem:[%s0 + $0x8] sm:$0xff]
    %v36 = vld [vmem:[%s0 + $0x10] sm:$0xff]
    %v37 = vld [vmem:[%s0 + $0x18] sm:$0xff]
    %v38 = vld [vmem:[%s0 + $0x20] sm:$0xff]
    %v39 = vld [vmem:[%s0 + $0x28] sm:$0xff]
    %v40 = vld [vmem:[%s0 + $0x30] sm:$0xff]
    %v41 = vld [vmem:[%s0 + $0x38] sm:$0xff]
    %v42 = vld [vmem:[%s0 + $0x40] sm:$0xff]
    %v43 = vld [vmem:[%s0 + $0x48] sm:$0xff]
    %v44 = vld [vmem:[%s0 + $0x50] sm:$0xff]
    %v45 = vld [vmem:[%s0 + $0x58] sm:$0xff]
    %v46 = vld [vmem:[%s0 + $0x60] sm:$0xff]
    %v47 = vld [vmem:[%s0 + $0x68] sm:$0xff]
    %v48 = vld [vmem:[%s0 + $0x70] sm:$0xff]
    %v49 = vld [vmem:[%s0 + $0x78] sm:$0xff]
    %v50 = vpack.c.bf16 %v35, %v34
    %v51 = vpack.c.bf16 %v37, %v36
    %v52 = vpack.c.bf16 %v39, %v38
    %v53 = vpack.c.bf16 %v41, %v40
    %v54 = vpack.c.bf16 %v43, %v42
    %v55 = vpack.c.bf16 %v45, %v44
    %v56 = vpack.c.bf16 %v47, %v46
    %v57 = vpack.c.bf16 %v49, %v48
    %v58 = vld [vmem:[%s1] sm:$0xf]
    %v59 = vld [vmem:[%s1 + $0x4] sm:$0xf]
    %v60 = vld [vmem:[%s1 + $0x8] sm:$0xf]
    %v61 = vld [vmem:[%s1 + $0xc] sm:$0xf]
    %v62 = vld [vmem:[%s1 + $0x10] sm:$0xf]
    %v63 = vld [vmem:[%s1 + $0x14] sm:$0xf]
    %v64 = vld [vmem:[%s1 + $0x18] sm:$0xf]
    %v65 = vld [vmem:[%s1 + $0x1c] sm:$0xf]
    %v66 = vld [vmem:[%s8] ss:$0 sm:$0xff]
    %v75 = vunpack.c.l.b16 %v58
    %v76 = vunpack.c.l.b16 %v59
    %v77 = vunpack.c.l.b16 %v60
    %v78 = vunpack.c.l.b16 %v61
    %v79 = vunpack.c.l.b16 %v62
    %v80 = vunpack.c.l.b16 %v63
    %v81 = vunpack.c.l.b16 %v64
    %v82 = vunpack.c.l.b16 %v65
    %v83 = vpack.c.b16 %v76, %v75
    %v84 = vpack.c.b16 %v78, %v77
    %v85 = vpack.c.b16 %v80, %v79
    %v86 = vpack.c.b16 %v82, %v81
    %vm91 = vcmask 523264
    %v93 = vsel %vm91, %v50, 0
    %v96 = vsel %vm91, %v51, 0
    %v99 = vsel %vm91, %v52, 0
    %v102 = vsel %vm91, %v53, 0
    %v105 = vsel %vm91, %v54, 0
    %v108 = vsel %vm91, %v55, 0
    %v111 = vsel %vm91, %v56, 0
    %v114 = vsel %vm91, %v57, 0
    %116 = vmatprep.subr.bf16.mxu0 0
    %117 = vmatpush1.bf16.msra.mxu0 0
    %118 = vmatprep.subr.bf16.mxu0 0
    %119 = vmatpush1.bf16.msra.mxu0 0
    %120 = vmatprep.subr.bf16.mxu0 0
    %121 = vmatpush1.bf16.msra.mxu0 0
    %122 = vmatprep.subr.bf16.mxu0 0
    %123 = vmatpush1.bf16.msra.mxu0 0
    %124 = vmatprep.subr.bf16.mxu0 0
    %125 = vmatpush1.bf16.msra.mxu0 %v86
    %126 = vmatprep.subr.bf16.mxu0 0
    %127 = vmatpush1.bf16.msra.mxu0 %v85
    %128 = vmatprep.subr.bf16.mxu0 0
    %129 = vmatpush1.bf16.msra.mxu0 %v84
    %130 = vmatprep.subr.bf16.mxu0 0
    %131 = vmatpush1.bf16.msra.mxu0 %v83
    %132 = vmatprep.subr.bf16.mxu0 0
    %133 = vmatpush2.bf16.msra.mxu0 0
    %134 = vmatprep.subr.bf16.mxu0 0
    %135 = vmatpush2.bf16.msra.mxu0 0
    %136 = vmatprep.subr.bf16.mxu0 0
    %137 = vmatpush2.bf16.msra.mxu0 0
    %138 = vmatprep.subr.bf16.mxu0 0
    %139 = vmatpush2.bf16.msra.mxu0 0
    %140 = vmatprep.subr.bf16.mxu0 0
    %141 = vmatpush2.bf16.msra.mxu0 0
    %142 = vmatprep.subr.bf16.mxu0 0
    %143 = vmatpush2.bf16.msra.mxu0 0
    %144 = vmatprep.subr.bf16.mxu0 0
    %145 = vmatpush2.bf16.msra.mxu0 0
    %146 = vmatprep.subr.bf16.mxu0 0
    %147 = vmatpush2.bf16.msra.mxu0 0
    %148 = vmatprep.mubr.bf16.mxu0 0
    %149 = vmatmul.mubr.bf16.gmra.mxu0 %v93
    %v150 = vpop.f32.mrf.mxu0
    %v151 = vadd.f32 %v66, %v150
    %v152 = vpop.f32.mrf.mxu0
    %v153 = vpop.f32.mrf.mxu0
    %v154 = vadd.f32 %v66, %v153
    %v155 = vpop.f32.mrf.mxu0
    %156 = vmatprep.mubr.bf16.mxu0 0
    %157 = vmatmul.mubr.bf16.gmra.mxu0 %v96
    %v158 = vpop.f32.mrf.mxu0
    %v159 = vadd.f32 %v66, %v158
    %v160 = vpop.f32.mrf.mxu0
    %v161 = vpop.f32.mrf.mxu0
    %v162 = vadd.f32 %v66, %v161
    %v163 = vpop.f32.mrf.mxu0
    %164 = vmatprep.mubr.bf16.mxu0 0
    %165 = vmatmul.mubr.bf16.gmra.mxu0 %v99
    %v166 = vpop.f32.mrf.mxu0
    %v167 = vadd.f32 %v66, %v166
    %v168 = vpop.f32.mrf.mxu0
    %v169 = vpop.f32.mrf.mxu0
    %v170 = vadd.f32 %v66, %v169
    %v171 = vpop.f32.mrf.mxu0
    %172 = vmatprep.mubr.bf16.mxu0 0
    %173 = vmatmul.mubr.bf16.gmra.mxu0 %v102
    %v174 = vpop.f32.mrf.mxu0
    %v175 = vadd.f32 %v66, %v174
    %v176 = vpop.f32.mrf.mxu0
    %v177 = vpop.f32.mrf.mxu0
    %v178 = vadd.f32 %v66, %v177
    %v179 = vpop.f32.mrf.mxu0
    %180 = vmatprep.mubr.bf16.mxu0 0
    %181 = vmatmul.mubr.bf16.gmra.mxu0 %v105
    %v182 = vpop.f32.mrf.mxu0
    %v183 = vadd.f32 %v66, %v182
    %v184 = vpop.f32.mrf.mxu0
    %v185 = vpop.f32.mrf.mxu0
    %v186 = vadd.f32 %v66, %v185
    %v187 = vpop.f32.mrf.mxu0
    %188 = vmatprep.mubr.bf16.mxu0 0
    %189 = vmatmul.mubr.bf16.gmra.mxu0 %v108
    %v190 = vpop.f32.mrf.mxu0
    %v191 = vadd.f32 %v66, %v190
    %v192 = vpop.f32.mrf.mxu0
    %v193 = vpop.f32.mrf.mxu0
    %v194 = vadd.f32 %v66, %v193
    %v195 = vpop.f32.mrf.mxu0
    %196 = vmatprep.mubr.bf16.mxu0 0
    %197 = vmatmul.mubr.bf16.gmra.mxu0 %v111
    %v198 = vpop.f32.mrf.mxu0
    %v199 = vadd.f32 %v66, %v198
    %v200 = vpop.f32.mrf.mxu0
    %v201 = vpop.f32.mrf.mxu0
    %v202 = vadd.f32 %v66, %v201
    %v203 = vpop.f32.mrf.mxu0
    %204 = vmatprep.mubr.bf16.mxu0 0
    %205 = vmatmul.mubr.bf16.gmra.mxu0 %v114
    %v206 = vpop.f32.mrf.mxu0
    %v207 = vadd.f32 %v66, %v206
    %v208 = vpop.f32.mrf.mxu0
    %v209 = vpop.f32.mrf.mxu0
    %v210 = vadd.f32 %v66, %v209
    %v211 = vpop.f32.mrf.mxu0
    %212 = vdwg.mxu0
    %v213 = vmax.f32 %v151, 0.0
    %v214 = vmax.f32 %v154, 0.0
    %v215 = vmax.f32 %v159, 0.0
    %v216 = vmax.f32 %v162, 0.0
    %v217 = vmax.f32 %v167, 0.0
    %v218 = vmax.f32 %v170, 0.0
    %v219 = vmax.f32 %v175, 0.0
    %v220 = vmax.f32 %v178, 0.0
    %v221 = vmax.f32 %v183, 0.0
    %v222 = vmax.f32 %v186, 0.0
    %v223 = vmax.f32 %v191, 0.0
    %v224 = vmax.f32 %v194, 0.0
    %v225 = vmax.f32 %v199, 0.0
    %v226 = vmax.f32 %v202, 0.0
    %v227 = vmax.f32 %v207, 0.0
    %v228 = vmax.f32 %v210, 0.0
    %v229 = vpack.c.bf16 %v214, %v213
    %v230 = vpack.c.bf16 %v216, %v215
    %v231 = vpack.c.bf16 %v218, %v217
    %v232 = vpack.c.bf16 %v220, %v219
    %v233 = vpack.c.bf16 %v222, %v221
    %v234 = vpack.c.bf16 %v224, %v223
    %v235 = vpack.c.bf16 %v226, %v225
    %v236 = vpack.c.bf16 %v228, %v227
    %v237 = vld [vmem:[%s2] sm:$0xf]
    %v238 = vld [vmem:[%s2 + $0x4] sm:$0xf]
    %v239 = vld [vmem:[%s2 + $0x8] sm:$0xf]
    %v240 = vld [vmem:[%s2 + $0xc] sm:$0xf]
    %v241 = vld [vmem:[%s2 + $0x10] sm:$0xf]
    %v242 = vld [vmem:[%s2 + $0x14] sm:$0xf]
    %v243 = vld [vmem:[%s2 + $0x18] sm:$0xf]
    %v244 = vld [vmem:[%s2 + $0x1c] sm:$0xf]
    %v245 = vld [vmem:[%s8 + $0x1] ss:$0 sm:$0xff]
    %v254 = vunpack.c.l.b16 %v237
    %v255 = vunpack.c.l.b16 %v238
    %v256 = vunpack.c.l.b16 %v239
    %v257 = vunpack.c.l.b16 %v240
    %v258 = vunpack.c.l.b16 %v241
    %v259 = vunpack.c.l.b16 %v242
    %v260 = vunpack.c.l.b16 %v243
    %v261 = vunpack.c.l.b16 %v244
    %v262 = vpack.c.b16 %v255, %v254
    %v263 = vpack.c.b16 %v257, %v256
    %v264 = vpack.c.b16 %v259, %v258
    %v265 = vpack.c.b16 %v261, %v260
    %v271 = vsel %vm91, %v229, 0
    %v274 = vsel %vm91, %v230, 0
    %v277 = vsel %vm91, %v231, 0
    %v280 = vsel %vm91, %v232, 0
    %v283 = vsel %vm91, %v233, 0
    %v286 = vsel %vm91, %v234, 0
    %v289 = vsel %vm91, %v235, 0
    %v292 = vsel %vm91, %v236, 0
    %294 = vmatprep.subr.bf16.mxu0 0
    %295 = vmatpush1.bf16.msra.mxu0 0
    %296 = vmatprep.subr.bf16.mxu0 0
    %297 = vmatpush1.bf16.msra.mxu0 0
    %298 = vmatprep.subr.bf16.mxu0 0
    %299 = vmatpush1.bf16.msra.mxu0 0
    %300 = vmatprep.subr.bf16.mxu0 0
    %301 = vmatpush1.bf16.msra.mxu0 0
    %302 = vmatprep.subr.bf16.mxu0 0
    %303 = vmatpush1.bf16.msra.mxu0 %v265
    %304 = vmatprep.subr.bf16.mxu0 0
    %305 = vmatpush1.bf16.msra.mxu0 %v264
    %306 = vmatprep.subr.bf16.mxu0 0
    %307 = vmatpush1.bf16.msra.mxu0 %v263
    %308 = vmatprep.subr.bf16.mxu0 0
    %309 = vmatpush1.bf16.msra.mxu0 %v262
    %310 = vmatprep.subr.bf16.mxu0 0
    %311 = vmatpush2.bf16.msra.mxu0 0
    %312 = vmatprep.subr.bf16.mxu0 0
    %313 = vmatpush2.bf16.msra.mxu0 0
    %314 = vmatprep.subr.bf16.mxu0 0
    %315 = vmatpush2.bf16.msra.mxu0 0
    %316 = vmatprep.subr.bf16.mxu0 0
    %317 = vmatpush2.bf16.msra.mxu0 0
    %318 = vmatprep.subr.bf16.mxu0 0
    %319 = vmatpush2.bf16.msra.mxu0 0
    %320 = vmatprep.subr.bf16.mxu0 0
    %321 = vmatpush2.bf16.msra.mxu0 0
    %322 = vmatprep.subr.bf16.mxu0 0
    %323 = vmatpush2.bf16.msra.mxu0 0
    %324 = vmatprep.subr.bf16.mxu0 0
    %325 = vmatpush2.bf16.msra.mxu0 0
    %326 = vmatprep.mubr.bf16.mxu0 0
    %327 = vmatmul.mubr.bf16.gmra.mxu0 %v271
    %v328 = vpop.f32.mrf.mxu0
    %v329 = vadd.f32 %v245, %v328
    %v330 = vpop.f32.mrf.mxu0
    %v331 = vpop.f32.mrf.mxu0
    %v332 = vadd.f32 %v245, %v331
    %v333 = vpop.f32.mrf.mxu0
    %334 = vmatprep.mubr.bf16.mxu0 0
    %335 = vmatmul.mubr.bf16.gmra.mxu0 %v274
    %v336 = vpop.f32.mrf.mxu0
    %v337 = vadd.f32 %v245, %v336
    %v338 = vpop.f32.mrf.mxu0
    %v339 = vpop.f32.mrf.mxu0
    %v340 = vadd.f32 %v245, %v339
    %v341 = vpop.f32.mrf.mxu0
    %342 = vmatprep.mubr.bf16.mxu0 0
    %343 = vmatmul.mubr.bf16.gmra.mxu0 %v277
    %v344 = vpop.f32.mrf.mxu0
    %v345 = vadd.f32 %v245, %v344
    %v346 = vpop.f32.mrf.mxu0
    %v347 = vpop.f32.mrf.mxu0
    %v348 = vadd.f32 %v245, %v347
    %v349 = vpop.f32.mrf.mxu0
    %350 = vmatprep.mubr.bf16.mxu0 0
    %351 = vmatmul.mubr.bf16.gmra.mxu0 %v280
    %v352 = vpop.f32.mrf.mxu0
    %v353 = vadd.f32 %v245, %v352
    %v354 = vpop.f32.mrf.mxu0
    %v355 = vpop.f32.mrf.mxu0
    %v356 = vadd.f32 %v245, %v355
    %v357 = vpop.f32.mrf.mxu0
    %358 = vmatprep.mubr.bf16.mxu0 0
    %359 = vmatmul.mubr.bf16.gmra.mxu0 %v283
    %v360 = vpop.f32.mrf.mxu0
    %v361 = vadd.f32 %v245, %v360
    %v362 = vpop.f32.mrf.mxu0
    %v363 = vpop.f32.mrf.mxu0
    %v364 = vadd.f32 %v245, %v363
    %v365 = vpop.f32.mrf.mxu0
    %366 = vmatprep.mubr.bf16.mxu0 0
    %367 = vmatmul.mubr.bf16.gmra.mxu0 %v286
    %v368 = vpop.f32.mrf.mxu0
    %v369 = vadd.f32 %v245, %v368
    %v370 = vpop.f32.mrf.mxu0
    %v371 = vpop.f32.mrf.mxu0
    %v372 = vadd.f32 %v245, %v371
    %v373 = vpop.f32.mrf.mxu0
    %374 = vmatprep.mubr.bf16.mxu0 0
    %375 = vmatmul.mubr.bf16.gmra.mxu0 %v289
    %v376 = vpop.f32.mrf.mxu0
    %v377 = vadd.f32 %v245, %v376
    %v378 = vpop.f32.mrf.mxu0
    %v379 = vpop.f32.mrf.mxu0
    %v380 = vadd.f32 %v245, %v379
    %v381 = vpop.f32.mrf.mxu0
    %382 = vmatprep.mubr.bf16.mxu0 0
    %383 = vmatmul.mubr.bf16.gmra.mxu0 %v292
    %v384 = vpop.f32.mrf.mxu0
    %v385 = vadd.f32 %v245, %v384
    %v386 = vpop.f32.mrf.mxu0
    %v387 = vpop.f32.mrf.mxu0
    %v388 = vadd.f32 %v245, %v387
    %v389 = vpop.f32.mrf.mxu0
    %390 = vdwg.mxu0
    %v391 = vmax.f32 %v329, 0.0
    %v392 = vmax.f32 %v332, 0.0
    %v393 = vmax.f32 %v337, 0.0
    %v394 = vmax.f32 %v340, 0.0
    %v395 = vmax.f32 %v345, 0.0
    %v396 = vmax.f32 %v348, 0.0
    %v397 = vmax.f32 %v353, 0.0
    %v398 = vmax.f32 %v356, 0.0
    %v399 = vmax.f32 %v361, 0.0
    %v400 = vmax.f32 %v364, 0.0
    %v401 = vmax.f32 %v369, 0.0
    %v402 = vmax.f32 %v372, 0.0
    %v403 = vmax.f32 %v377, 0.0
    %v404 = vmax.f32 %v380, 0.0
    %v405 = vmax.f32 %v385, 0.0
    %v406 = vmax.f32 %v388, 0.0
    %v407 = vpack.c.bf16 %v392, %v391
    %v408 = vpack.c.bf16 %v394, %v393
    %v409 = vpack.c.bf16 %v396, %v395
    %v410 = vpack.c.bf16 %v398, %v397
    %v411 = vpack.c.bf16 %v400, %v399
    %v412 = vpack.c.bf16 %v402, %v401
    %v413 = vpack.c.bf16 %v404, %v403
    %v414 = vpack.c.bf16 %v406, %v405
    %v415 = vld [vmem:[%s3] sm:$0xf]
    %v416 = vld [vmem:[%s3 + $0x4] sm:$0xf]
    %v417 = vld [vmem:[%s3 + $0x8] sm:$0xf]
    %v418 = vld [vmem:[%s3 + $0xc] sm:$0xf]
    %v419 = vld [vmem:[%s3 + $0x10] sm:$0xf]
    %v420 = vld [vmem:[%s3 + $0x14] sm:$0xf]
    %v421 = vld [vmem:[%s3 + $0x18] sm:$0xf]
    %v422 = vld [vmem:[%s3 + $0x1c] sm:$0xf]
    %v423 = vld [vmem:[%s8 + $0x2] ss:$0 sm:$0xff]
    %v432 = vunpack.c.l.b16 %v415
    %v433 = vunpack.c.l.b16 %v416
    %v434 = vunpack.c.l.b16 %v417
    %v435 = vunpack.c.l.b16 %v418
    %v436 = vunpack.c.l.b16 %v419
    %v437 = vunpack.c.l.b16 %v420
    %v438 = vunpack.c.l.b16 %v421
    %v439 = vunpack.c.l.b16 %v422
    %v440 = vpack.c.b16 %v433, %v432
    %v441 = vpack.c.b16 %v435, %v434
    %v442 = vpack.c.b16 %v437, %v436
    %v443 = vpack.c.b16 %v439, %v438
    %v449 = vsel %vm91, %v407, 0
    %v452 = vsel %vm91, %v408, 0
    %v455 = vsel %vm91, %v409, 0
    %v458 = vsel %vm91, %v410, 0
    %v461 = vsel %vm91, %v411, 0
    %v464 = vsel %vm91, %v412, 0
    %v467 = vsel %vm91, %v413, 0
    %v470 = vsel %vm91, %v414, 0
    %472 = vmatprep.subr.bf16.mxu0 0
    %473 = vmatpush1.bf16.msra.mxu0 0
    %474 = vmatprep.subr.bf16.mxu0 0
    %475 = vmatpush1.bf16.msra.mxu0 0
    %476 = vmatprep.subr.bf16.mxu0 0
    %477 = vmatpush1.bf16.msra.mxu0 0
    %478 = vmatprep.subr.bf16.mxu0 0
    %479 = vmatpush1.bf16.msra.mxu0 0
    %480 = vmatprep.subr.bf16.mxu0 0
    %481 = vmatpush1.bf16.msra.mxu0 %v443
    %482 = vmatprep.subr.bf16.mxu0 0
    %483 = vmatpush1.bf16.msra.mxu0 %v442
    %484 = vmatprep.subr.bf16.mxu0 0
    %485 = vmatpush1.bf16.msra.mxu0 %v441
    %486 = vmatprep.subr.bf16.mxu0 0
    %487 = vmatpush1.bf16.msra.mxu0 %v440
    %488 = vmatprep.subr.bf16.mxu0 0
    %489 = vmatpush2.bf16.msra.mxu0 0
    %490 = vmatprep.subr.bf16.mxu0 0
    %491 = vmatpush2.bf16.msra.mxu0 0
    %492 = vmatprep.subr.bf16.mxu0 0
    %493 = vmatpush2.bf16.msra.mxu0 0
    %494 = vmatprep.subr.bf16.mxu0 0
    %495 = vmatpush2.bf16.msra.mxu0 0
    %496 = vmatprep.subr.bf16.mxu0 0
    %497 = vmatpush2.bf16.msra.mxu0 0
    %498 = vmatprep.subr.bf16.mxu0 0
    %499 = vmatpush2.bf16.msra.mxu0 0
    %500 = vmatprep.subr.bf16.mxu0 0
    %501 = vmatpush2.bf16.msra.mxu0 0
    %502 = vmatprep.subr.bf16.mxu0 0
    %503 = vmatpush2.bf16.msra.mxu0 0
    %504 = vmatprep.mubr.bf16.mxu0 0
    %505 = vmatmul.mubr.bf16.gmra.mxu0 %v449
    %v506 = vpop.f32.mrf.mxu0
    %v507 = vadd.f32 %v423, %v506
    %v508 = vpop.f32.mrf.mxu0
    %v509 = vpop.f32.mrf.mxu0
    %v510 = vadd.f32 %v423, %v509
    %v511 = vpop.f32.mrf.mxu0
    %512 = vmatprep.mubr.bf16.mxu0 0
    %513 = vmatmul.mubr.bf16.gmra.mxu0 %v452
    %v514 = vpop.f32.mrf.mxu0
    %v515 = vadd.f32 %v423, %v514
    %v516 = vpop.f32.mrf.mxu0
    %v517 = vpop.f32.mrf.mxu0
    %v518 = vadd.f32 %v423, %v517
    %v519 = vpop.f32.mrf.mxu0
    %520 = vmatprep.mubr.bf16.mxu0 0
    %521 = vmatmul.mubr.bf16.gmra.mxu0 %v455
    %v522 = vpop.f32.mrf.mxu0
    %v523 = vadd.f32 %v423, %v522
    %v524 = vpop.f32.mrf.mxu0
    %v525 = vpop.f32.mrf.mxu0
    %v526 = vadd.f32 %v423, %v525
    %v527 = vpop.f32.mrf.mxu0
    %528 = vmatprep.mubr.bf16.mxu0 0
    %529 = vmatmul.mubr.bf16.gmra.mxu0 %v458
    %v530 = vpop.f32.mrf.mxu0
    %v531 = vadd.f32 %v423, %v530
    %v532 = vpop.f32.mrf.mxu0
    %v533 = vpop.f32.mrf.mxu0
    %v534 = vadd.f32 %v423, %v533
    %v535 = vpop.f32.mrf.mxu0
    %536 = vmatprep.mubr.bf16.mxu0 0
    %537 = vmatmul.mubr.bf16.gmra.mxu0 %v461
    %v538 = vpop.f32.mrf.mxu0
    %v539 = vadd.f32 %v423, %v538
    %v540 = vpop.f32.mrf.mxu0
    %v541 = vpop.f32.mrf.mxu0
    %v542 = vadd.f32 %v423, %v541
    %v543 = vpop.f32.mrf.mxu0
    %544 = vmatprep.mubr.bf16.mxu0 0
    %545 = vmatmul.mubr.bf16.gmra.mxu0 %v464
    %v546 = vpop.f32.mrf.mxu0
    %v547 = vadd.f32 %v423, %v546
    %v548 = vpop.f32.mrf.mxu0
    %v549 = vpop.f32.mrf.mxu0
    %v550 = vadd.f32 %v423, %v549
    %v551 = vpop.f32.mrf.mxu0
    %552 = vmatprep.mubr.bf16.mxu0 0
    %553 = vmatmul.mubr.bf16.gmra.mxu0 %v467
    %v554 = vpop.f32.mrf.mxu0
    %v555 = vadd.f32 %v423, %v554
    %v556 = vpop.f32.mrf.mxu0
    %v557 = vpop.f32.mrf.mxu0
    %v558 = vadd.f32 %v423, %v557
    %v559 = vpop.f32.mrf.mxu0
    %560 = vmatprep.mubr.bf16.mxu0 0
    %561 = vmatmul.mubr.bf16.gmra.mxu0 %v470
    %v562 = vpop.f32.mrf.mxu0
    %v563 = vadd.f32 %v423, %v562
    %v564 = vpop.f32.mrf.mxu0
    %v565 = vpop.f32.mrf.mxu0
    %v566 = vadd.f32 %v423, %v565
    %v567 = vpop.f32.mrf.mxu0
    %568 = vdwg.mxu0
    %v569 = vadd.f32 %v213, %v507
    %v570 = vadd.f32 %v214, %v510
    %v571 = vadd.f32 %v215, %v515
    %v572 = vadd.f32 %v216, %v518
    %v573 = vadd.f32 %v217, %v523
    %v574 = vadd.f32 %v218, %v526
    %v575 = vadd.f32 %v219, %v531
    %v576 = vadd.f32 %v220, %v534
    %v577 = vadd.f32 %v221, %v539
    %v578 = vadd.f32 %v222, %v542
    %v579 = vadd.f32 %v223, %v547
    %v580 = vadd.f32 %v224, %v550
    %v581 = vadd.f32 %v225, %v555
    %v582 = vadd.f32 %v226, %v558
    %v583 = vadd.f32 %v227, %v563
    %v584 = vadd.f32 %v228, %v566
    %v585 = vmax.f32 %v569, 0.0
    %v586 = vmax.f32 %v570, 0.0
    %v587 = vmax.f32 %v571, 0.0
    %v588 = vmax.f32 %v572, 0.0
    %v589 = vmax.f32 %v573, 0.0
    %v590 = vmax.f32 %v574, 0.0
    %v591 = vmax.f32 %v575, 0.0
    %v592 = vmax.f32 %v576, 0.0
    %v593 = vmax.f32 %v577, 0.0
    %v594 = vmax.f32 %v578, 0.0
    %v595 = vmax.f32 %v579, 0.0
    %v596 = vmax.f32 %v580, 0.0
    %v597 = vmax.f32 %v581, 0.0
    %v598 = vmax.f32 %v582, 0.0
    %v599 = vmax.f32 %v583, 0.0
    %v600 = vmax.f32 %v584, 0.0
    %v601 = vpack.c.bf16 %v586, %v585
    %v602 = vpack.c.bf16 %v588, %v587
    %v603 = vpack.c.bf16 %v590, %v589
    %v604 = vpack.c.bf16 %v592, %v591
    %v605 = vpack.c.bf16 %v594, %v593
    %v606 = vpack.c.bf16 %v596, %v595
    %v607 = vpack.c.bf16 %v598, %v597
    %v608 = vpack.c.bf16 %v600, %v599
    %v609 = vld [vmem:[%s4] sm:$0xf]
    %v610 = vld [vmem:[%s4 + $0x4] sm:$0xf]
    %v611 = vld [vmem:[%s4 + $0x8] sm:$0xf]
    %v612 = vld [vmem:[%s4 + $0xc] sm:$0xf]
    %v613 = vld [vmem:[%s4 + $0x10] sm:$0xf]
    %v614 = vld [vmem:[%s4 + $0x14] sm:$0xf]
    %v615 = vld [vmem:[%s4 + $0x18] sm:$0xf]
    %v616 = vld [vmem:[%s4 + $0x1c] sm:$0xf]
    %v617 = vld [vmem:[%s8 + $0x3] ss:$0 sm:$0xff]
    %v626 = vunpack.c.l.b16 %v609
    %v627 = vunpack.c.l.b16 %v610
    %v628 = vunpack.c.l.b16 %v611
    %v629 = vunpack.c.l.b16 %v612
    %v630 = vunpack.c.l.b16 %v613
    %v631 = vunpack.c.l.b16 %v614
    %v632 = vunpack.c.l.b16 %v615
    %v633 = vunpack.c.l.b16 %v616
    %v634 = vpack.c.b16 %v627, %v626
    %v635 = vpack.c.b16 %v629, %v628
    %v636 = vpack.c.b16 %v631, %v630
    %v637 = vpack.c.b16 %v633, %v632
    %v643 = vsel %vm91, %v601, 0
    %v646 = vsel %vm91, %v602, 0
    %v649 = vsel %vm91, %v603, 0
    %v652 = vsel %vm91, %v604, 0
    %v655 = vsel %vm91, %v605, 0
    %v658 = vsel %vm91, %v606, 0
    %v661 = vsel %vm91, %v607, 0
    %v664 = vsel %vm91, %v608, 0
    %666 = vmatprep.subr.bf16.mxu0 0
    %667 = vmatpush1.bf16.msra.mxu0 0
    %668 = vmatprep.subr.bf16.mxu0 0
    %669 = vmatpush1.bf16.msra.mxu0 0
    %670 = vmatprep.subr.bf16.mxu0 0
    %671 = vmatpush1.bf16.msra.mxu0 0
    %672 = vmatprep.subr.bf16.mxu0 0
    %673 = vmatpush1.bf16.msra.mxu0 0
    %674 = vmatprep.subr.bf16.mxu0 0
    %675 = vmatpush1.bf16.msra.mxu0 %v637
    %676 = vmatprep.subr.bf16.mxu0 0
    %677 = vmatpush1.bf16.msra.mxu0 %v636
    %678 = vmatprep.subr.bf16.mxu0 0
    %679 = vmatpush1.bf16.msra.mxu0 %v635
    %680 = vmatprep.subr.bf16.mxu0 0
    %681 = vmatpush1.bf16.msra.mxu0 %v634
    %682 = vmatprep.subr.bf16.mxu0 0
    %683 = vmatpush2.bf16.msra.mxu0 0
    %684 = vmatprep.subr.bf16.mxu0 0
    %685 = vmatpush2.bf16.msra.mxu0 0
    %686 = vmatprep.subr.bf16.mxu0 0
    %687 = vmatpush2.bf16.msra.mxu0 0
    %688 = vmatprep.subr.bf16.mxu0 0
    %689 = vmatpush2.bf16.msra.mxu0 0
    %690 = vmatprep.subr.bf16.mxu0 0
    %691 = vmatpush2.bf16.msra.mxu0 0
    %692 = vmatprep.subr.bf16.mxu0 0
    %693 = vmatpush2.bf16.msra.mxu0 0
    %694 = vmatprep.subr.bf16.mxu0 0
    %695 = vmatpush2.bf16.msra.mxu0 0
    %696 = vmatprep.subr.bf16.mxu0 0
    %697 = vmatpush2.bf16.msra.mxu0 0
    %698 = vmatprep.mubr.bf16.mxu0 0
    %699 = vmatmul.mubr.bf16.gmra.mxu0 %v643
    %v700 = vpop.f32.mrf.mxu0
    %v701 = vadd.f32 %v617, %v700
    %v702 = vpop.f32.mrf.mxu0
    %v703 = vpop.f32.mrf.mxu0
    %v704 = vadd.f32 %v617, %v703
    %v705 = vpop.f32.mrf.mxu0
    %706 = vmatprep.mubr.bf16.mxu0 0
    %707 = vmatmul.mubr.bf16.gmra.mxu0 %v646
    %v708 = vpop.f32.mrf.mxu0
    %v709 = vadd.f32 %v617, %v708
    %v710 = vpop.f32.mrf.mxu0
    %v711 = vpop.f32.mrf.mxu0
    %v712 = vadd.f32 %v617, %v711
    %v713 = vpop.f32.mrf.mxu0
    %714 = vmatprep.mubr.bf16.mxu0 0
    %715 = vmatmul.mubr.bf16.gmra.mxu0 %v649
    %v716 = vpop.f32.mrf.mxu0
    %v717 = vadd.f32 %v617, %v716
    %v718 = vpop.f32.mrf.mxu0
    %v719 = vpop.f32.mrf.mxu0
    %v720 = vadd.f32 %v617, %v719
    %v721 = vpop.f32.mrf.mxu0
    %722 = vmatprep.mubr.bf16.mxu0 0
    %723 = vmatmul.mubr.bf16.gmra.mxu0 %v652
    %v724 = vpop.f32.mrf.mxu0
    %v725 = vadd.f32 %v617, %v724
    %v726 = vpop.f32.mrf.mxu0
    %v727 = vpop.f32.mrf.mxu0
    %v728 = vadd.f32 %v617, %v727
    %v729 = vpop.f32.mrf.mxu0
    %730 = vmatprep.mubr.bf16.mxu0 0
    %731 = vmatmul.mubr.bf16.gmra.mxu0 %v655
    %v732 = vpop.f32.mrf.mxu0
    %v733 = vadd.f32 %v617, %v732
    %v734 = vpop.f32.mrf.mxu0
    %v735 = vpop.f32.mrf.mxu0
    %v736 = vadd.f32 %v617, %v735
    %v737 = vpop.f32.mrf.mxu0
    %738 = vmatprep.mubr.bf16.mxu0 0
    %739 = vmatmul.mubr.bf16.gmra.mxu0 %v658
    %v740 = vpop.f32.mrf.mxu0
    %v741 = vadd.f32 %v617, %v740
    %v742 = vpop.f32.mrf.mxu0
    %v743 = vpop.f32.mrf.mxu0
    %v744 = vadd.f32 %v617, %v743
    %v745 = vpop.f32.mrf.mxu0
    %746 = vmatprep.mubr.bf16.mxu0 0
    %747 = vmatmul.mubr.bf16.gmra.mxu0 %v661
    %v748 = vpop.f32.mrf.mxu0
    %v749 = vadd.f32 %v617, %v748
    %v750 = vpop.f32.mrf.mxu0
    %v751 = vpop.f32.mrf.mxu0
    %v752 = vadd.f32 %v617, %v751
    %v753 = vpop.f32.mrf.mxu0
    %754 = vmatprep.mubr.bf16.mxu0 0
    %755 = vmatmul.mubr.bf16.gmra.mxu0 %v664
    %v756 = vpop.f32.mrf.mxu0
    %v757 = vadd.f32 %v617, %v756
    %v758 = vpop.f32.mrf.mxu0
    %v759 = vpop.f32.mrf.mxu0
    %v760 = vadd.f32 %v617, %v759
    %v761 = vpop.f32.mrf.mxu0
    %762 = vdwg.mxu0
    %v763 = vmax.f32 %v701, 0.0
    %v764 = vmax.f32 %v704, 0.0
    %v765 = vmax.f32 %v709, 0.0
    %v766 = vmax.f32 %v712, 0.0
    %v767 = vmax.f32 %v717, 0.0
    %v768 = vmax.f32 %v720, 0.0
    %v769 = vmax.f32 %v725, 0.0
    %v770 = vmax.f32 %v728, 0.0
    %v771 = vmax.f32 %v733, 0.0
    %v772 = vmax.f32 %v736, 0.0
    %v773 = vmax.f32 %v741, 0.0
    %v774 = vmax.f32 %v744, 0.0
    %v775 = vmax.f32 %v749, 0.0
    %v776 = vmax.f32 %v752, 0.0
    %v777 = vmax.f32 %v757, 0.0
    %v778 = vmax.f32 %v760, 0.0
    %v779 = vpack.c.bf16 %v764, %v763
    %v780 = vpack.c.bf16 %v766, %v765
    %v781 = vpack.c.bf16 %v768, %v767
    %v782 = vpack.c.bf16 %v770, %v769
    %v783 = vpack.c.bf16 %v772, %v771
    %v784 = vpack.c.bf16 %v774, %v773
    %v785 = vpack.c.bf16 %v776, %v775
    %v786 = vpack.c.bf16 %v778, %v777
    %v787 = vld [vmem:[%s5] sm:$0xff]
    %v788 = vld [vmem:[%s5 + $0x8] sm:$0xff]
    %v789 = vld [vmem:[%s5 + $0x10] sm:$0xff]
    %v790 = vld [vmem:[%s5 + $0x18] sm:$0xff]
    %v791 = vld [vmem:[%s5 + $0x20] sm:$0xff]
    %v792 = vld [vmem:[%s5 + $0x28] sm:$0xff]
    %v793 = vld [vmem:[%s5 + $0x30] sm:$0xff]
    %v794 = vld [vmem:[%s5 + $0x38] sm:$0xff]
    %v795 = vld [vmem:[%s5 + $0x40] sm:$0xff]
    %v796 = vld [vmem:[%s5 + $0x48] sm:$0xff]
    %v797 = vld [vmem:[%s5 + $0x50] sm:$0xff]
    %v798 = vld [vmem:[%s5 + $0x58] sm:$0xff]
    %v799 = vld [vmem:[%s5 + $0x60] sm:$0xff]
    %v800 = vld [vmem:[%s5 + $0x68] sm:$0xff]
    %v801 = vld [vmem:[%s5 + $0x70] sm:$0xff]
    %v802 = vld [vmem:[%s5 + $0x78] sm:$0xff]
    %s803 = scalar_lea.vmem %s8, 4
    %v804 = vld [vmem:[%s803] ss:$8 sm:$0x3]
    %v806 = vlaneseq
    %v807 = vshrl.u32 %v806, 7
    %v808 = vsub.s32 0, %v807
    %v809 = vrot.slane %v804, %v808
    %v810 = vlaneseq
    %v811 = vshrl.u32 %v810, 7
    %v812 = vsub.s32 1, %v811
    %v813 = vrot.slane %v804, %v812
    %v832 = vunpack.c.l.b16 %v787
    %v833 = vunpack.c.h.b16 %v787
    %v834 = vunpack.c.l.b16 %v788
    %v835 = vunpack.c.h.b16 %v788
    %v836 = vunpack.c.l.b16 %v789
    %v837 = vunpack.c.h.b16 %v789
    %v838 = vunpack.c.l.b16 %v790
    %v839 = vunpack.c.h.b16 %v790
    %v840 = vunpack.c.l.b16 %v791
    %v841 = vunpack.c.h.b16 %v791
    %v842 = vunpack.c.l.b16 %v792
    %v843 = vunpack.c.h.b16 %v792
    %v844 = vunpack.c.l.b16 %v793
    %v845 = vunpack.c.h.b16 %v793
    %v846 = vunpack.c.l.b16 %v794
    %v847 = vunpack.c.h.b16 %v794
    %v848 = vunpack.c.l.b16 %v795
    %v849 = vunpack.c.h.b16 %v795
    %v850 = vunpack.c.l.b16 %v796
    %v851 = vunpack.c.h.b16 %v796
    %v852 = vunpack.c.l.b16 %v797
    %v853 = vunpack.c.h.b16 %v797
    %v854 = vunpack.c.l.b16 %v798
    %v855 = vunpack.c.h.b16 %v798
    %v856 = vunpack.c.l.b16 %v799
    %v857 = vunpack.c.h.b16 %v799
    %v858 = vunpack.c.l.b16 %v800
    %v859 = vunpack.c.h.b16 %v800
    %v860 = vunpack.c.l.b16 %v801
    %v861 = vunpack.c.h.b16 %v801
    %v862 = vunpack.c.l.b16 %v802
    %v863 = vunpack.c.h.b16 %v802
    %v864 = vpack.c.b16 %v834, %v832
    %v865 = vpack.c.b16 %v835, %v833
    %v866 = vpack.c.b16 %v838, %v836
    %v867 = vpack.c.b16 %v839, %v837
    %v868 = vpack.c.b16 %v842, %v840
    %v869 = vpack.c.b16 %v843, %v841
    %v870 = vpack.c.b16 %v846, %v844
    %v871 = vpack.c.b16 %v847, %v845
    %v872 = vpack.c.b16 %v850, %v848
    %v873 = vpack.c.b16 %v851, %v849
    %v874 = vpack.c.b16 %v854, %v852
    %v875 = vpack.c.b16 %v855, %v853
    %v876 = vpack.c.b16 %v858, %v856
    %v877 = vpack.c.b16 %v859, %v857
    %v878 = vpack.c.b16 %v862, %v860
    %v879 = vpack.c.b16 %v863, %v861
    %896 = vmatprep.subr.bf16.mxu0 %v879
    %897 = vmatpush1.bf16.msra.mxu0 %v878
    %898 = vmatprep.subr.bf16.mxu0 %v877
    %899 = vmatpush1.bf16.msra.mxu0 %v876
    %900 = vmatprep.subr.bf16.mxu0 %v875
    %901 = vmatpush1.bf16.msra.mxu0 %v874
    %902 = vmatprep.subr.bf16.mxu0 %v873
    %903 = vmatpush1.bf16.msra.mxu0 %v872
    %904 = vmatprep.subr.bf16.mxu0 %v871
    %905 = vmatpush1.bf16.msra.mxu0 %v870
    %906 = vmatprep.subr.bf16.mxu0 %v869
    %907 = vmatpush1.bf16.msra.mxu0 %v868
    %908 = vmatprep.subr.bf16.mxu0 %v867
    %909 = vmatpush1.bf16.msra.mxu0 %v866
    %910 = vmatprep.subr.bf16.mxu0 %v865
    %911 = vmatpush1.bf16.msra.mxu0 %v864
    %912 = vmatprep.subr.bf16.mxu0 0
    %913 = vmatpush2.bf16.msra.mxu0 0
    %914 = vmatprep.subr.bf16.mxu0 0
    %915 = vmatpush2.bf16.msra.mxu0 0
    %916 = vmatprep.subr.bf16.mxu0 0
    %917 = vmatpush2.bf16.msra.mxu0 0
    %918 = vmatprep.subr.bf16.mxu0 0
    %919 = vmatpush2.bf16.msra.mxu0 0
    %920 = vmatprep.subr.bf16.mxu0 0
    %921 = vmatpush2.bf16.msra.mxu0 0
    %922 = vmatprep.subr.bf16.mxu0 0
    %923 = vmatpush2.bf16.msra.mxu0 0
    %924 = vmatprep.subr.bf16.mxu0 0
    %925 = vmatpush2.bf16.msra.mxu0 0
    %926 = vmatprep.subr.bf16.mxu0 0
    %927 = vmatpush2.bf16.msra.mxu0 0
    %928 = vmatprep.mubr.bf16.mxu0 0
    %929 = vmatmul.mubr.bf16.gmra.mxu0 %v779
    %v930 = vpop.f32.mrf.mxu0
    %v931 = vadd.f32 %v809, %v930
    %v932 = vpop.f32.mrf.mxu0
    %v933 = vadd.f32 %v813, %v932
    %v934 = vpop.f32.mrf.mxu0
    %v935 = vadd.f32 %v809, %v934
    %v936 = vpop.f32.mrf.mxu0
    %v937 = vadd.f32 %v813, %v936
    %938 = vmatprep.mubr.bf16.mxu0 0
    %939 = vmatmul.mubr.bf16.gmra.mxu0 %v780
    %v940 = vpop.f32.mrf.mxu0
    %v941 = vadd.f32 %v809, %v940
    %v942 = vpop.f32.mrf.mxu0
    %v943 = vadd.f32 %v813, %v942
    %v944 = vpop.f32.mrf.mxu0
    %v945 = vadd.f32 %v809, %v944
    %v946 = vpop.f32.mrf.mxu0
    %v947 = vadd.f32 %v813, %v946
    %948 = vmatprep.mubr.bf16.mxu0 0
    %949 = vmatmul.mubr.bf16.gmra.mxu0 %v781
    %v950 = vpop.f32.mrf.mxu0
    %v951 = vadd.f32 %v809, %v950
    %v952 = vpop.f32.mrf.mxu0
    %v953 = vadd.f32 %v813, %v952
    %v954 = vpop.f32.mrf.mxu0
    %v955 = vadd.f32 %v809, %v954
    %v956 = vpop.f32.mrf.mxu0
    %v957 = vadd.f32 %v813, %v956
    %958 = vmatprep.mubr.bf16.mxu0 0
    %959 = vmatmul.mubr.bf16.gmra.mxu0 %v782
    %v960 = vpop.f32.mrf.mxu0
    %v961 = vadd.f32 %v809, %v960
    %v962 = vpop.f32.mrf.mxu0
    %v963 = vadd.f32 %v813, %v962
    %v964 = vpop.f32.mrf.mxu0
    %v965 = vadd.f32 %v809, %v964
    %v966 = vpop.f32.mrf.mxu0
    %v967 = vadd.f32 %v813, %v966
    %968 = vmatprep.mubr.bf16.mxu0 0
    %969 = vmatmul.mubr.bf16.gmra.mxu0 %v783
    %v970 = vpop.f32.mrf.mxu0
    %v971 = vadd.f32 %v809, %v970
    %v972 = vpop.f32.mrf.mxu0
    %v973 = vadd.f32 %v813, %v972
    %v974 = vpop.f32.mrf.mxu0
    %v975 = vadd.f32 %v809, %v974
    %v976 = vpop.f32.mrf.mxu0
    %v977 = vadd.f32 %v813, %v976
    %978 = vmatprep.mubr.bf16.mxu0 0
    %979 = vmatmul.mubr.bf16.gmra.mxu0 %v784
    %v980 = vpop.f32.mrf.mxu0
    %v981 = vadd.f32 %v809, %v980
    %v982 = vpop.f32.mrf.mxu0
    %v983 = vadd.f32 %v813, %v982
    %v984 = vpop.f32.mrf.mxu0
    %v985 = vadd.f32 %v809, %v984
    %v986 = vpop.f32.mrf.mxu0
    %v987 = vadd.f32 %v813, %v986
    %988 = vmatprep.mubr.bf16.mxu0 0
    %989 = vmatmul.mubr.bf16.gmra.mxu0 %v785
    %v990 = vpop.f32.mrf.mxu0
    %v991 = vadd.f32 %v809, %v990
    %v992 = vpop.f32.mrf.mxu0
    %v993 = vadd.f32 %v813, %v992
    %v994 = vpop.f32.mrf.mxu0
    %v995 = vadd.f32 %v809, %v994
    %v996 = vpop.f32.mrf.mxu0
    %v997 = vadd.f32 %v813, %v996
    %998 = vmatprep.mubr.bf16.mxu0 0
    %999 = vmatmul.mubr.bf16.gmra.mxu0 %v786
    %v1000 = vpop.f32.mrf.mxu0
    %v1001 = vadd.f32 %v809, %v1000
    %v1002 = vpop.f32.mrf.mxu0
    %v1003 = vadd.f32 %v813, %v1002
    %v1004 = vpop.f32.mrf.mxu0
    %v1005 = vadd.f32 %v809, %v1004
    %v1006 = vpop.f32.mrf.mxu0
    %v1007 = vadd.f32 %v813, %v1006
    %1008 = vdwg.mxu0
    %v1009 = vmax.f32 %v931, 0.0
    %v1010 = vmax.f32 %v933, 0.0
    %v1011 = vmax.f32 %v935, 0.0
    %v1012 = vmax.f32 %v937, 0.0
    %v1013 = vmax.f32 %v941, 0.0
    %v1014 = vmax.f32 %v943, 0.0
    %v1015 = vmax.f32 %v945, 0.0
    %v1016 = vmax.f32 %v947, 0.0
    %v1017 = vmax.f32 %v951, 0.0
    %v1018 = vmax.f32 %v953, 0.0
    %v1019 = vmax.f32 %v955, 0.0
    %v1020 = vmax.f32 %v957, 0.0
    %v1021 = vmax.f32 %v961, 0.0
    %v1022 = vmax.f32 %v963, 0.0
    %v1023 = vmax.f32 %v965, 0.0
    %v1024 = vmax.f32 %v967, 0.0
    %v1025 = vmax.f32 %v971, 0.0
    %v1026 = vmax.f32 %v973, 0.0
    %v1027 = vmax.f32 %v975, 0.0
    %v1028 = vmax.f32 %v977, 0.0
    %v1029 = vmax.f32 %v981, 0.0
    %v1030 = vmax.f32 %v983, 0.0
    %v1031 = vmax.f32 %v985, 0.0
    %v1032 = vmax.f32 %v987, 0.0
    %v1033 = vmax.f32 %v991, 0.0
    %v1034 = vmax.f32 %v993, 0.0
    %v1035 = vmax.f32 %v995, 0.0
    %v1036 = vmax.f32 %v997, 0.0
    %v1037 = vmax.f32 %v1001, 0.0
    %v1038 = vmax.f32 %v1003, 0.0
    %v1039 = vmax.f32 %v1005, 0.0
    %v1040 = vmax.f32 %v1007, 0.0
    %v1041 = vpack.c.bf16 %v1011, %v1009
    %v1042 = vpack.c.bf16 %v1012, %v1010
    %v1043 = vpack.c.bf16 %v1015, %v1013
    %v1044 = vpack.c.bf16 %v1016, %v1014
    %v1045 = vpack.c.bf16 %v1019, %v1017
    %v1046 = vpack.c.bf16 %v1020, %v1018
    %v1047 = vpack.c.bf16 %v1023, %v1021
    %v1048 = vpack.c.bf16 %v1024, %v1022
    %v1049 = vpack.c.bf16 %v1027, %v1025
    %v1050 = vpack.c.bf16 %v1028, %v1026
    %v1051 = vpack.c.bf16 %v1031, %v1029
    %v1052 = vpack.c.bf16 %v1032, %v1030
    %v1053 = vpack.c.bf16 %v1035, %v1033
    %v1054 = vpack.c.bf16 %v1036, %v1034
    %v1055 = vpack.c.bf16 %v1039, %v1037
    %v1056 = vpack.c.bf16 %v1040, %v1038
    %v1057 = vld [vmem:[%s6] sm:$0xff]
    %v1058 = vld [vmem:[%s6 + $0x8] sm:$0xff]
    %v1059 = vld [vmem:[%s6 + $0x10] sm:$0xff]
    %v1060 = vld [vmem:[%s6 + $0x18] sm:$0xff]
    %v1061 = vld [vmem:[%s6 + $0x20] sm:$0xff]
    %v1062 = vld [vmem:[%s6 + $0x28] sm:$0xff]
    %v1063 = vld [vmem:[%s6 + $0x30] sm:$0xff]
    %v1064 = vld [vmem:[%s6 + $0x38] sm:$0xff]
    %v1065 = vld [vmem:[%s6 + $0x40] sm:$0xff]
    %v1066 = vld [vmem:[%s6 + $0x48] sm:$0xff]
    %v1067 = vld [vmem:[%s6 + $0x50] sm:$0xff]
    %v1068 = vld [vmem:[%s6 + $0x58] sm:$0xff]
    %v1069 = vld [vmem:[%s6 + $0x60] sm:$0xff]
    %v1070 = vld [vmem:[%s6 + $0x68] sm:$0xff]
    %v1071 = vld [vmem:[%s6 + $0x70] sm:$0xff]
    %v1072 = vld [vmem:[%s6 + $0x78] sm:$0xff]
    %v1073 = vld [vmem:[%s6 + $0x80] sm:$0xff]
    %v1074 = vld [vmem:[%s6 + $0x88] sm:$0xff]
    %v1075 = vld [vmem:[%s6 + $0x90] sm:$0xff]
    %v1076 = vld [vmem:[%s6 + $0x98] sm:$0xff]
    %v1077 = vld [vmem:[%s6 + $0xa0] sm:$0xff]
    %v1078 = vld [vmem:[%s6 + $0xa8] sm:$0xff]
    %v1079 = vld [vmem:[%s6 + $0xb0] sm:$0xff]
    %v1080 = vld [vmem:[%s6 + $0xb8] sm:$0xff]
    %v1081 = vld [vmem:[%s6 + $0xc0] sm:$0xff]
    %v1082 = vld [vmem:[%s6 + $0xc8] sm:$0xff]
    %v1083 = vld [vmem:[%s6 + $0xd0] sm:$0xff]
    %v1084 = vld [vmem:[%s6 + $0xd8] sm:$0xff]
    %v1085 = vld [vmem:[%s6 + $0xe0] sm:$0xff]
    %v1086 = vld [vmem:[%s6 + $0xe8] sm:$0xff]
    %v1087 = vld [vmem:[%s6 + $0xf0] sm:$0xff]
    %v1088 = vld [vmem:[%s6 + $0xf8] sm:$0xff]
    %v1089 = vld [vmem:[%s6 + $0x100] sm:$0xff]
    %v1090 = vld [vmem:[%s6 + $0x108] sm:$0xff]
    %v1091 = vld [vmem:[%s6 + $0x110] sm:$0xff]
    %v1092 = vld [vmem:[%s6 + $0x118] sm:$0xff]
    %v1093 = vld [vmem:[%s6 + $0x120] sm:$0xff]
    %v1094 = vld [vmem:[%s6 + $0x128] sm:$0xff]
    %v1095 = vld [vmem:[%s6 + $0x130] sm:$0xff]
    %v1096 = vld [vmem:[%s6 + $0x138] sm:$0xff]
    %v1097 = vld [vmem:[%s6 + $0x140] sm:$0xff]
    %v1098 = vld [vmem:[%s6 + $0x148] sm:$0xff]
    %v1099 = vld [vmem:[%s6 + $0x150] sm:$0xff]
    %v1100 = vld [vmem:[%s6 + $0x158] sm:$0xff]
    %v1101 = vld [vmem:[%s6 + $0x160] sm:$0xff]
    %v1102 = vld [vmem:[%s6 + $0x168] sm:$0xff]
    %v1103 = vld [vmem:[%s6 + $0x170] sm:$0xff]
    %v1104 = vld [vmem:[%s6 + $0x178] sm:$0xff]
    %v1105 = vld [vmem:[%s6 + $0x180] sm:$0xff]
    %v1106 = vld [vmem:[%s6 + $0x188] sm:$0xff]
    %v1107 = vld [vmem:[%s6 + $0x190] sm:$0xff]
    %v1108 = vld [vmem:[%s6 + $0x198] sm:$0xff]
    %v1109 = vld [vmem:[%s6 + $0x1a0] sm:$0xff]
    %v1110 = vld [vmem:[%s6 + $0x1a8] sm:$0xff]
    %v1111 = vld [vmem:[%s6 + $0x1b0] sm:$0xff]
    %v1112 = vld [vmem:[%s6 + $0x1b8] sm:$0xff]
    %v1113 = vld [vmem:[%s6 + $0x1c0] sm:$0xff]
    %v1114 = vld [vmem:[%s6 + $0x1c8] sm:$0xff]
    %v1115 = vld [vmem:[%s6 + $0x1d0] sm:$0xff]
    %v1116 = vld [vmem:[%s6 + $0x1d8] sm:$0xff]
    %v1117 = vld [vmem:[%s6 + $0x1e0] sm:$0xff]
    %v1118 = vld [vmem:[%s6 + $0x1e8] sm:$0xff]
    %v1119 = vld [vmem:[%s6 + $0x1f0] sm:$0xff]
    %v1120 = vld [vmem:[%s6 + $0x1f8] sm:$0xff]
    %s1121 = scalar_lea.vmem %s8, 5
    %v1122 = vld [vmem:[%s1121] ss:$8 sm:$0xf]
    %v1124 = vlaneseq
    %v1125 = vshrl.u32 %v1124, 7
    %v1126 = vsub.s32 0, %v1125
    %v1127 = vrot.slane %v1122, %v1126
    %v1128 = vlaneseq
    %v1129 = vshrl.u32 %v1128, 7
    %v1130 = vsub.s32 1, %v1129
    %v1131 = vrot.slane %v1122, %v1130
    %v1132 = vlaneseq
    %v1133 = vshrl.u32 %v1132, 7
    %v1134 = vsub.s32 2, %v1133
    %v1135 = vrot.slane %v1122, %v1134
    %v1136 = vlaneseq
    %v1137 = vshrl.u32 %v1136, 7
    %v1138 = vsub.s32 3, %v1137
    %v1139 = vrot.slane %v1122, %v1138
    %v1208 = vunpack.c.l.b16 %v1057
    %v1209 = vunpack.c.h.b16 %v1057
    %v1210 = vunpack.c.l.b16 %v1058
    %v1211 = vunpack.c.h.b16 %v1058
    %v1212 = vunpack.c.l.b16 %v1059
    %v1213 = vunpack.c.h.b16 %v1059
    %v1214 = vunpack.c.l.b16 %v1060
    %v1215 = vunpack.c.h.b16 %v1060
    %v1216 = vunpack.c.l.b16 %v1061
    %v1217 = vunpack.c.h.b16 %v1061
    %v1218 = vunpack.c.l.b16 %v1062
    %v1219 = vunpack.c.h.b16 %v1062
    %v1220 = vunpack.c.l.b16 %v1063
    %v1221 = vunpack.c.h.b16 %v1063
    %v1222 = vunpack.c.l.b16 %v1064
    %v1223 = vunpack.c.h.b16 %v1064
    %v1224 = vunpack.c.l.b16 %v1065
    %v1225 = vunpack.c.h.b16 %v1065
    %v1226 = vunpack.c.l.b16 %v1066
    %v1227 = vunpack.c.h.b16 %v1066
    %v1228 = vunpack.c.l.b16 %v1067
    %v1229 = vunpack.c.h.b16 %v1067
    %v1230 = vunpack.c.l.b16 %v1068
    %v1231 = vunpack.c.h.b16 %v1068
    %v1232 = vunpack.c.l.b16 %v1069
    %v1233 = vunpack.c.h.b16 %v1069
    %v1234 = vunpack.c.l.b16 %v1070
    %v1235 = vunpack.c.h.b16 %v1070
    %v1236 = vunpack.c.l.b16 %v1071
    %v1237 = vunpack.c.h.b16 %v1071
    %v1238 = vunpack.c.l.b16 %v1072
    %v1239 = vunpack.c.h.b16 %v1072
    %v1240 = vunpack.c.l.b16 %v1073
    %v1241 = vunpack.c.h.b16 %v1073
    %v1242 = vunpack.c.l.b16 %v1074
    %v1243 = vunpack.c.h.b16 %v1074
    %v1244 = vunpack.c.l.b16 %v1075
    %v1245 = vunpack.c.h.b16 %v1075
    %v1246 = vunpack.c.l.b16 %v1076
    %v1247 = vunpack.c.h.b16 %v1076
    %v1248 = vunpack.c.l.b16 %v1077
    %v1249 = vunpack.c.h.b16 %v1077
    %v1250 = vunpack.c.l.b16 %v1078
    %v1251 = vunpack.c.h.b16 %v1078
    %v1252 = vunpack.c.l.b16 %v1079
    %v1253 = vunpack.c.h.b16 %v1079
    %v1254 = vunpack.c.l.b16 %v1080
    %v1255 = vunpack.c.h.b16 %v1080
    %v1256 = vunpack.c.l.b16 %v1081
    %v1257 = vunpack.c.h.b16 %v1081
    %v1258 = vunpack.c.l.b16 %v1082
    %v1259 = vunpack.c.h.b16 %v1082
    %v1260 = vunpack.c.l.b16 %v1083
    %v1261 = vunpack.c.h.b16 %v1083
    %v1262 = vunpack.c.l.b16 %v1084
    %v1263 = vunpack.c.h.b16 %v1084
    %v1264 = vunpack.c.l.b16 %v1085
    %v1265 = vunpack.c.h.b16 %v1085
    %v1266 = vunpack.c.l.b16 %v1086
    %v1267 = vunpack.c.h.b16 %v1086
    %v1268 = vunpack.c.l.b16 %v1087
    %v1269 = vunpack.c.h.b16 %v1087
    %v1270 = vunpack.c.l.b16 %v1088
    %v1271 = vunpack.c.h.b16 %v1088
    %v1272 = vunpack.c.l.b16 %v1089
    %v1273 = vunpack.c.h.b16 %v1089
    %v1274 = vunpack.c.l.b16 %v1090
    %v1275 = vunpack.c.h.b16 %v1090
    %v1276 = vunpack.c.l.b16 %v1091
    %v1277 = vunpack.c.h.b16 %v1091
    %v1278 = vunpack.c.l.b16 %v1092
    %v1279 = vunpack.c.h.b16 %v1092
    %v1280 = vunpack.c.l.b16 %v1093
    %v1281 = vunpack.c.h.b16 %v1093
    %v1282 = vunpack.c.l.b16 %v1094
    %v1283 = vunpack.c.h.b16 %v1094
    %v1284 = vunpack.c.l.b16 %v1095
    %v1285 = vunpack.c.h.b16 %v1095
    %v1286 = vunpack.c.l.b16 %v1096
    %v1287 = vunpack.c.h.b16 %v1096
    %v1288 = vunpack.c.l.b16 %v1097
    %v1289 = vunpack.c.h.b16 %v1097
    %v1290 = vunpack.c.l.b16 %v1098
    %v1291 = vunpack.c.h.b16 %v1098
    %v1292 = vunpack.c.l.b16 %v1099
    %v1293 = vunpack.c.h.b16 %v1099
    %v1294 = vunpack.c.l.b16 %v1100
    %v1295 = vunpack.c.h.b16 %v1100
    %v1296 = vunpack.c.l.b16 %v1101
    %v1297 = vunpack.c.h.b16 %v1101
    %v1298 = vunpack.c.l.b16 %v1102
    %v1299 = vunpack.c.h.b16 %v1102
    %v1300 = vunpack.c.l.b16 %v1103
    %v1301 = vunpack.c.h.b16 %v1103
    %v1302 = vunpack.c.l.b16 %v1104
    %v1303 = vunpack.c.h.b16 %v1104
    %v1304 = vunpack.c.l.b16 %v1105
    %v1305 = vunpack.c.h.b16 %v1105
    %v1306 = vunpack.c.l.b16 %v1106
    %v1307 = vunpack.c.h.b16 %v1106
    %v1308 = vunpack.c.l.b16 %v1107
    %v1309 = vunpack.c.h.b16 %v1107
    %v1310 = vunpack.c.l.b16 %v1108
    %v1311 = vunpack.c.h.b16 %v1108
    %v1312 = vunpack.c.l.b16 %v1109
    %v1313 = vunpack.c.h.b16 %v1109
    %v1314 = vunpack.c.l.b16 %v1110
    %v1315 = vunpack.c.h.b16 %v1110
    %v1316 = vunpack.c.l.b16 %v1111
    %v1317 = vunpack.c.h.b16 %v1111
    %v1318 = vunpack.c.l.b16 %v1112
    %v1319 = vunpack.c.h.b16 %v1112
    %v1320 = vunpack.c.l.b16 %v1113
    %v1321 = vunpack.c.h.b16 %v1113
    %v1322 = vunpack.c.l.b16 %v1114
    %v1323 = vunpack.c.h.b16 %v1114
    %v1324 = vunpack.c.l.b16 %v1115
    %v1325 = vunpack.c.h.b16 %v1115
    %v1326 = vunpack.c.l.b16 %v1116
    %v1327 = vunpack.c.h.b16 %v1116
    %v1328 = vunpack.c.l.b16 %v1117
    %v1329 = vunpack.c.h.b16 %v1117
    %v1330 = vunpack.c.l.b16 %v1118
    %v1331 = vunpack.c.h.b16 %v1118
    %v1332 = vunpack.c.l.b16 %v1119
    %v1333 = vunpack.c.h.b16 %v1119
    %v1334 = vunpack.c.l.b16 %v1120
    %v1335 = vunpack.c.h.b16 %v1120
    %v1336 = vpack.c.b16 %v1212, %v1208
    %v1337 = vpack.c.b16 %v1213, %v1209
    %v1338 = vpack.c.b16 %v1214, %v1210
    %v1339 = vpack.c.b16 %v1215, %v1211
    %v1340 = vpack.c.b16 %v1220, %v1216
    %v1341 = vpack.c.b16 %v1221, %v1217
    %v1342 = vpack.c.b16 %v1222, %v1218
    %v1343 = vpack.c.b16 %v1223, %v1219
    %v1344 = vpack.c.b16 %v1228, %v1224
    %v1345 = vpack.c.b16 %v1229, %v1225
    %v1346 = vpack.c.b16 %v1230, %v1226
    %v1347 = vpack.c.b16 %v1231, %v1227
    %v1348 = vpack.c.b16 %v1236, %v1232
    %v1349 = vpack.c.b16 %v1237, %v1233
    %v1350 = vpack.c.b16 %v1238, %v1234
    %v1351 = vpack.c.b16 %v1239, %v1235
    %v1352 = vpack.c.b16 %v1244, %v1240
    %v1353 = vpack.c.b16 %v1245, %v1241
    %v1354 = vpack.c.b16 %v1246, %v1242
    %v1355 = vpack.c.b16 %v1247, %v1243
    %v1356 = vpack.c.b16 %v1252, %v1248
    %v1357 = vpack.c.b16 %v1253, %v1249
    %v1358 = vpack.c.b16 %v1254, %v1250
    %v1359 = vpack.c.b16 %v1255, %v1251
    %v1360 = vpack.c.b16 %v1260, %v1256
    %v1361 = vpack.c.b16 %v1261, %v1257
    %v1362 = vpack.c.b16 %v1262, %v1258
    %v1363 = vpack.c.b16 %v1263, %v1259
    %v1364 = vpack.c.b16 %v1268, %v1264
    %v1365 = vpack.c.b16 %v1269, %v1265
    %v1366 = vpack.c.b16 %v1270, %v1266
    %v1367 = vpack.c.b16 %v1271, %v1267
    %v1368 = vpack.c.b16 %v1276, %v1272
    %v1369 = vpack.c.b16 %v1277, %v1273
    %v1370 = vpack.c.b16 %v1278, %v1274
    %v1371 = vpack.c.b16 %v1279, %v1275
    %v1372 = vpack.c.b16 %v1284, %v1280
    %v1373 = vpack.c.b16 %v1285, %v1281
    %v1374 = vpack.c.b16 %v1286, %v1282
    %v1375 = vpack.c.b16 %v1287, %v1283
    %v1376 = vpack.c.b16 %v1292, %v1288
    %v1377 = vpack.c.b16 %v1293, %v1289
    %v1378 = vpack.c.b16 %v1294, %v1290
    %v1379 = vpack.c.b16 %v1295, %v1291
    %v1380 = vpack.c.b16 %v1300, %v1296
    %v1381 = vpack.c.b16 %v1301, %v1297
    %v1382 = vpack.c.b16 %v1302, %v1298
    %v1383 = vpack.c.b16 %v1303, %v1299
    %v1384 = vpack.c.b16 %v1308, %v1304
    %v1385 = vpack.c.b16 %v1309, %v1305
    %v1386 = vpack.c.b16 %v1310, %v1306
    %v1387 = vpack.c.b16 %v1311, %v1307
    %v1388 = vpack.c.b16 %v1316, %v1312
    %v1389 = vpack.c.b16 %v1317, %v1313
    %v1390 = vpack.c.b16 %v1318, %v1314
    %v1391 = vpack.c.b16 %v1319, %v1315
    %v1392 = vpack.c.b16 %v1324, %v1320
    %v1393 = vpack.c.b16 %v1325, %v1321
    %v1394 = vpack.c.b16 %v1326, %v1322
    %v1395 = vpack.c.b16 %v1327, %v1323
    %v1396 = vpack.c.b16 %v1332, %v1328
    %v1397 = vpack.c.b16 %v1333, %v1329
    %v1398 = vpack.c.b16 %v1334, %v1330
    %v1399 = vpack.c.b16 %v1335, %v1331
    %1464 = vmatprep.subr.bf16.mxu0 %v1365
    %1465 = vmatpush1.bf16.msra.mxu0 %v1364
    %1466 = vmatprep.subr.bf16.mxu0 %v1361
    %1467 = vmatpush1.bf16.msra.mxu0 %v1360
    %1468 = vmatprep.subr.bf16.mxu0 %v1357
    %1469 = vmatpush1.bf16.msra.mxu0 %v1356
    %1470 = vmatprep.subr.bf16.mxu0 %v1353
    %1471 = vmatpush1.bf16.msra.mxu0 %v1352
    %1472 = vmatprep.subr.bf16.mxu0 %v1349
    %1473 = vmatpush1.bf16.msra.mxu0 %v1348
    %1474 = vmatprep.subr.bf16.mxu0 %v1345
    %1475 = vmatpush1.bf16.msra.mxu0 %v1344
    %1476 = vmatprep.subr.bf16.mxu0 %v1341
    %1477 = vmatpush1.bf16.msra.mxu0 %v1340
    %1478 = vmatprep.subr.bf16.mxu0 %v1337
    %1479 = vmatpush1.bf16.msra.mxu0 %v1336
    %1480 = vmatprep.subr.bf16.mxu0 %v1397
    %1481 = vmatpush2.bf16.msra.mxu0 %v1396
    %1482 = vmatprep.subr.bf16.mxu0 %v1393
    %1483 = vmatpush2.bf16.msra.mxu0 %v1392
    %1484 = vmatprep.subr.bf16.mxu0 %v1389
    %1485 = vmatpush2.bf16.msra.mxu0 %v1388
    %1486 = vmatprep.subr.bf16.mxu0 %v1385
    %1487 = vmatpush2.bf16.msra.mxu0 %v1384
    %1488 = vmatprep.subr.bf16.mxu0 %v1381
    %1489 = vmatpush2.bf16.msra.mxu0 %v1380
    %1490 = vmatprep.subr.bf16.mxu0 %v1377
    %1491 = vmatpush2.bf16.msra.mxu0 %v1376
    %1492 = vmatprep.subr.bf16.mxu0 %v1373
    %1493 = vmatpush2.bf16.msra.mxu0 %v1372
    %1494 = vmatprep.subr.bf16.mxu0 %v1369
    %1495 = vmatpush2.bf16.msra.mxu0 %v1368
    %1496 = vmatprep.mubr.bf16.mxu0 %v1042
    %1497 = vmatmul.mubr.bf16.gmra.mxu0 %v1041
    %v1498 = vpop.f32.mrf.mxu0
    %v1499 = vadd.f32 %v1127, %v1498
    %v1500 = vpop.f32.mrf.mxu0
    %v1501 = vadd.f32 %v1131, %v1500
    %v1502 = vpop.f32.mrf.mxu0
    %v1503 = vadd.f32 %v1127, %v1502
    %v1504 = vpop.f32.mrf.mxu0
    %v1505 = vadd.f32 %v1131, %v1504
    %1506 = vmatprep.mubr.bf16.mxu0 %v1044
    %1507 = vmatmul.mubr.bf16.gmra.mxu0 %v1043
    %v1508 = vpop.f32.mrf.mxu0
    %v1509 = vadd.f32 %v1127, %v1508
    %v1510 = vpop.f32.mrf.mxu0
    %v1511 = vadd.f32 %v1131, %v1510
    %v1512 = vpop.f32.mrf.mxu0
    %v1513 = vadd.f32 %v1127, %v1512
    %v1514 = vpop.f32.mrf.mxu0
    %v1515 = vadd.f32 %v1131, %v1514
    %1516 = vmatprep.mubr.bf16.mxu0 %v1046
    %1517 = vmatmul.mubr.bf16.gmra.mxu0 %v1045
    %v1518 = vpop.f32.mrf.mxu0
    %v1519 = vadd.f32 %v1127, %v1518
    %v1520 = vpop.f32.mrf.mxu0
    %v1521 = vadd.f32 %v1131, %v1520
    %v1522 = vpop.f32.mrf.mxu0
    %v1523 = vadd.f32 %v1127, %v1522
    %v1524 = vpop.f32.mrf.mxu0
    %v1525 = vadd.f32 %v1131, %v1524
    %1526 = vmatprep.mubr.bf16.mxu0 %v1048
    %1527 = vmatmul.mubr.bf16.gmra.mxu0 %v1047
    %v1528 = vpop.f32.mrf.mxu0
    %v1529 = vadd.f32 %v1127, %v1528
    %v1530 = vpop.f32.mrf.mxu0
    %v1531 = vadd.f32 %v1131, %v1530
    %v1532 = vpop.f32.mrf.mxu0
    %v1533 = vadd.f32 %v1127, %v1532
    %v1534 = vpop.f32.mrf.mxu0
    %v1535 = vadd.f32 %v1131, %v1534
    %1536 = vmatprep.mubr.bf16.mxu0 %v1050
    %1537 = vmatmul.mubr.bf16.gmra.mxu0 %v1049
    %v1538 = vpop.f32.mrf.mxu0
    %v1539 = vadd.f32 %v1127, %v1538
    %v1540 = vpop.f32.mrf.mxu0
    %v1541 = vadd.f32 %v1131, %v1540
    %v1542 = vpop.f32.mrf.mxu0
    %v1543 = vadd.f32 %v1127, %v1542
    %v1544 = vpop.f32.mrf.mxu0
    %v1545 = vadd.f32 %v1131, %v1544
    %1546 = vmatprep.mubr.bf16.mxu0 %v1052
    %1547 = vmatmul.mubr.bf16.gmra.mxu0 %v1051
    %v1548 = vpop.f32.mrf.mxu0
    %v1549 = vadd.f32 %v1127, %v1548
    %v1550 = vpop.f32.mrf.mxu0
    %v1551 = vadd.f32 %v1131, %v1550
    %v1552 = vpop.f32.mrf.mxu0
    %v1553 = vadd.f32 %v1127, %v1552
    %v1554 = vpop.f32.mrf.mxu0
    %v1555 = vadd.f32 %v1131, %v1554
    %1556 = vmatprep.mubr.bf16.mxu0 %v1054
    %1557 = vmatmul.mubr.bf16.gmra.mxu0 %v1053
    %v1558 = vpop.f32.mrf.mxu0
    %v1559 = vadd.f32 %v1127, %v1558
    %v1560 = vpop.f32.mrf.mxu0
    %v1561 = vadd.f32 %v1131, %v1560
    %v1562 = vpop.f32.mrf.mxu0
    %v1563 = vadd.f32 %v1127, %v1562
    %v1564 = vpop.f32.mrf.mxu0
    %v1565 = vadd.f32 %v1131, %v1564
    %1566 = vmatprep.mubr.bf16.mxu0 %v1056
    %1567 = vmatmul.mubr.bf16.gmra.mxu0 %v1055
    %v1568 = vpop.f32.mrf.mxu0
    %v1569 = vadd.f32 %v1127, %v1568
    %v1570 = vpop.f32.mrf.mxu0
    %v1571 = vadd.f32 %v1131, %v1570
    %v1572 = vpop.f32.mrf.mxu0
    %v1573 = vadd.f32 %v1127, %v1572
    %v1574 = vpop.f32.mrf.mxu0
    %v1575 = vadd.f32 %v1131, %v1574
    %1576 = vdwg.mxu0
    %1577 = vmatprep.subr.bf16.mxu0 %v1367
    %1578 = vmatpush1.bf16.msra.mxu0 %v1366
    %1579 = vmatprep.subr.bf16.mxu0 %v1363
    %1580 = vmatpush1.bf16.msra.mxu0 %v1362
    %1581 = vmatprep.subr.bf16.mxu0 %v1359
    %1582 = vmatpush1.bf16.msra.mxu0 %v1358
    %1583 = vmatprep.subr.bf16.mxu0 %v1355
    %1584 = vmatpush1.bf16.msra.mxu0 %v1354
    %1585 = vmatprep.subr.bf16.mxu0 %v1351
    %1586 = vmatpush1.bf16.msra.mxu0 %v1350
    %1587 = vmatprep.subr.bf16.mxu0 %v1347
    %1588 = vmatpush1.bf16.msra.mxu0 %v1346
    %1589 = vmatprep.subr.bf16.mxu0 %v1343
    %1590 = vmatpush1.bf16.msra.mxu0 %v1342
    %1591 = vmatprep.subr.bf16.mxu0 %v1339
    %1592 = vmatpush1.bf16.msra.mxu0 %v1338
    %1593 = vmatprep.subr.bf16.mxu0 %v1399
    %1594 = vmatpush2.bf16.msra.mxu0 %v1398
    %1595 = vmatprep.subr.bf16.mxu0 %v1395
    %1596 = vmatpush2.bf16.msra.mxu0 %v1394
    %1597 = vmatprep.subr.bf16.mxu0 %v1391
    %1598 = vmatpush2.bf16.msra.mxu0 %v1390
    %1599 = vmatprep.subr.bf16.mxu0 %v1387
    %1600 = vmatpush2.bf16.msra.mxu0 %v1386
    %1601 = vmatprep.subr.bf16.mxu0 %v1383
    %1602 = vmatpush2.bf16.msra.mxu0 %v1382
    %1603 = vmatprep.subr.bf16.mxu0 %v1379
    %1604 = vmatpush2.bf16.msra.mxu0 %v1378
    %1605 = vmatprep.subr.bf16.mxu0 %v1375
    %1606 = vmatpush2.bf16.msra.mxu0 %v1374
    %1607 = vmatprep.subr.bf16.mxu0 %v1371
    %1608 = vmatpush2.bf16.msra.mxu0 %v1370
    %1609 = vmatprep.mubr.bf16.mxu0 %v1042
    %1610 = vmatmul.mubr.bf16.gmra.mxu0 %v1041
    %v1611 = vpop.f32.mrf.mxu0
    %v1612 = vadd.f32 %v1135, %v1611
    %v1613 = vpop.f32.mrf.mxu0
    %v1614 = vadd.f32 %v1139, %v1613
    %v1615 = vpop.f32.mrf.mxu0
    %v1616 = vadd.f32 %v1135, %v1615
    %v1617 = vpop.f32.mrf.mxu0
    %v1618 = vadd.f32 %v1139, %v1617
    %1619 = vmatprep.mubr.bf16.mxu0 %v1044
    %1620 = vmatmul.mubr.bf16.gmra.mxu0 %v1043
    %v1621 = vpop.f32.mrf.mxu0
    %v1622 = vadd.f32 %v1135, %v1621
    %v1623 = vpop.f32.mrf.mxu0
    %v1624 = vadd.f32 %v1139, %v1623
    %v1625 = vpop.f32.mrf.mxu0
    %v1626 = vadd.f32 %v1135, %v1625
    %v1627 = vpop.f32.mrf.mxu0
    %v1628 = vadd.f32 %v1139, %v1627
    %1629 = vmatprep.mubr.bf16.mxu0 %v1046
    %1630 = vmatmul.mubr.bf16.gmra.mxu0 %v1045
    %v1631 = vpop.f32.mrf.mxu0
    %v1632 = vadd.f32 %v1135, %v1631
    %v1633 = vpop.f32.mrf.mxu0
    %v1634 = vadd.f32 %v1139, %v1633
    %v1635 = vpop.f32.mrf.mxu0
    %v1636 = vadd.f32 %v1135, %v1635
    %v1637 = vpop.f32.mrf.mxu0
    %v1638 = vadd.f32 %v1139, %v1637
    %1639 = vmatprep.mubr.bf16.mxu0 %v1048
    %1640 = vmatmul.mubr.bf16.gmra.mxu0 %v1047
    %v1641 = vpop.f32.mrf.mxu0
    %v1642 = vadd.f32 %v1135, %v1641
    %v1643 = vpop.f32.mrf.mxu0
    %v1644 = vadd.f32 %v1139, %v1643
    %v1645 = vpop.f32.mrf.mxu0
    %v1646 = vadd.f32 %v1135, %v1645
    %v1647 = vpop.f32.mrf.mxu0
    %v1648 = vadd.f32 %v1139, %v1647
    %1649 = vmatprep.mubr.bf16.mxu0 %v1050
    %1650 = vmatmul.mubr.bf16.gmra.mxu0 %v1049
    %v1651 = vpop.f32.mrf.mxu0
    %v1652 = vadd.f32 %v1135, %v1651
    %v1653 = vpop.f32.mrf.mxu0
    %v1654 = vadd.f32 %v1139, %v1653
    %v1655 = vpop.f32.mrf.mxu0
    %v1656 = vadd.f32 %v1135, %v1655
    %v1657 = vpop.f32.mrf.mxu0
    %v1658 = vadd.f32 %v1139, %v1657
    %1659 = vmatprep.mubr.bf16.mxu0 %v1052
    %1660 = vmatmul.mubr.bf16.gmra.mxu0 %v1051
    %v1661 = vpop.f32.mrf.mxu0
    %v1662 = vadd.f32 %v1135, %v1661
    %v1663 = vpop.f32.mrf.mxu0
    %v1664 = vadd.f32 %v1139, %v1663
    %v1665 = vpop.f32.mrf.mxu0
    %v1666 = vadd.f32 %v1135, %v1665
    %v1667 = vpop.f32.mrf.mxu0
    %v1668 = vadd.f32 %v1139, %v1667
    %1669 = vmatprep.mubr.bf16.mxu0 %v1054
    %1670 = vmatmul.mubr.bf16.gmra.mxu0 %v1053
    %v1671 = vpop.f32.mrf.mxu0
    %v1672 = vadd.f32 %v1135, %v1671
    %v1673 = vpop.f32.mrf.mxu0
    %v1674 = vadd.f32 %v1139, %v1673
    %v1675 = vpop.f32.mrf.mxu0
    %v1676 = vadd.f32 %v1135, %v1675
    %v1677 = vpop.f32.mrf.mxu0
    %v1678 = vadd.f32 %v1139, %v1677
    %1679 = vmatprep.mubr.bf16.mxu0 %v1056
    %1680 = vmatmul.mubr.bf16.gmra.mxu0 %v1055
    %v1681 = vpop.f32.mrf.mxu0
    %v1682 = vadd.f32 %v1135, %v1681
    %v1683 = vpop.f32.mrf.mxu0
    %v1684 = vadd.f32 %v1139, %v1683
    %v1685 = vpop.f32.mrf.mxu0
    %v1686 = vadd.f32 %v1135, %v1685
    %v1687 = vpop.f32.mrf.mxu0
    %v1688 = vadd.f32 %v1139, %v1687
    %1689 = vdwg.mxu0
    %v1690 = vmax.f32 %v1499, 0.0
    %v1691 = vmax.f32 %v1501, 0.0
    %v1692 = vmax.f32 %v1612, 0.0
    %v1693 = vmax.f32 %v1614, 0.0
    %v1694 = vmax.f32 %v1503, 0.0
    %v1695 = vmax.f32 %v1505, 0.0
    %v1696 = vmax.f32 %v1616, 0.0
    %v1697 = vmax.f32 %v1618, 0.0
    %v1698 = vmax.f32 %v1509, 0.0
    %v1699 = vmax.f32 %v1511, 0.0
    %v1700 = vmax.f32 %v1622, 0.0
    %v1701 = vmax.f32 %v1624, 0.0
    %v1702 = vmax.f32 %v1513, 0.0
    %v1703 = vmax.f32 %v1515, 0.0
    %v1704 = vmax.f32 %v1626, 0.0
    %v1705 = vmax.f32 %v1628, 0.0
    %v1706 = vmax.f32 %v1519, 0.0
    %v1707 = vmax.f32 %v1521, 0.0
    %v1708 = vmax.f32 %v1632, 0.0
    %v1709 = vmax.f32 %v1634, 0.0
    %v1710 = vmax.f32 %v1523, 0.0
    %v1711 = vmax.f32 %v1525, 0.0
    %v1712 = vmax.f32 %v1636, 0.0
    %v1713 = vmax.f32 %v1638, 0.0
    %v1714 = vmax.f32 %v1529, 0.0
    %v1715 = vmax.f32 %v1531, 0.0
    %v1716 = vmax.f32 %v1642, 0.0
    %v1717 = vmax.f32 %v1644, 0.0
    %v1718 = vmax.f32 %v1533, 0.0
    %v1719 = vmax.f32 %v1535, 0.0
    %v1720 = vmax.f32 %v1646, 0.0
    %v1721 = vmax.f32 %v1648, 0.0
    %v1722 = vmax.f32 %v1539, 0.0
    %v1723 = vmax.f32 %v1541, 0.0
    %v1724 = vmax.f32 %v1652, 0.0
    %v1725 = vmax.f32 %v1654, 0.0
    %v1726 = vmax.f32 %v1543, 0.0
    %v1727 = vmax.f32 %v1545, 0.0
    %v1728 = vmax.f32 %v1656, 0.0
    %v1729 = vmax.f32 %v1658, 0.0
    %v1730 = vmax.f32 %v1549, 0.0
    %v1731 = vmax.f32 %v1551, 0.0
    %v1732 = vmax.f32 %v1662, 0.0
    %v1733 = vmax.f32 %v1664, 0.0
    %v1734 = vmax.f32 %v1553, 0.0
    %v1735 = vmax.f32 %v1555, 0.0
    %v1736 = vmax.f32 %v1666, 0.0
    %v1737 = vmax.f32 %v1668, 0.0
    %v1738 = vmax.f32 %v1559, 0.0
    %v1739 = vmax.f32 %v1561, 0.0
    %v1740 = vmax.f32 %v1672, 0.0
    %v1741 = vmax.f32 %v1674, 0.0
    %v1742 = vmax.f32 %v1563, 0.0
    %v1743 = vmax.f32 %v1565, 0.0
    %v1744 = vmax.f32 %v1676, 0.0
    %v1745 = vmax.f32 %v1678, 0.0
    %v1746 = vmax.f32 %v1569, 0.0
    %v1747 = vmax.f32 %v1571, 0.0
    %v1748 = vmax.f32 %v1682, 0.0
    %v1749 = vmax.f32 %v1684, 0.0
    %v1750 = vmax.f32 %v1573, 0.0
    %v1751 = vmax.f32 %v1575, 0.0
    %v1752 = vmax.f32 %v1686, 0.0
    %v1753 = vmax.f32 %v1688, 0.0
    %v1754 = vadd.f32 %v1690, %v1694
    %v1755 = vadd.f32 %v1754, %v1698
    %v1756 = vadd.f32 %v1755, %v1702
    %v1757 = vadd.f32 %v1756, %v1706
    %v1758 = vadd.f32 %v1757, %v1710
    %v1759 = vadd.f32 %v1758, %v1714
    %v1760 = vadd.f32 %v1759, %v1718
    %v1761 = vrot.slane %v1760, 4
    %v1762 = vadd.f32 %v1760, %v1761
    %v1763 = vrot.slane %v1762, 2
    %v1764 = vadd.f32 %v1762, %v1763
    %v1765 = vrot.slane %v1764, 1
    %v1766 = vadd.f32 %v1764, %v1765
    %v1767 = vadd.f32 %v1691, %v1695
    %v1768 = vadd.f32 %v1767, %v1699
    %v1769 = vadd.f32 %v1768, %v1703
    %v1770 = vadd.f32 %v1769, %v1707
    %v1771 = vadd.f32 %v1770, %v1711
    %v1772 = vadd.f32 %v1771, %v1715
    %v1773 = vadd.f32 %v1772, %v1719
    %v1774 = vrot.slane %v1773, 4
    %v1775 = vadd.f32 %v1773, %v1774
    %v1776 = vrot.slane %v1775, 2
    %v1777 = vadd.f32 %v1775, %v1776
    %v1778 = vrot.slane %v1777, 1
    %v1779 = vadd.f32 %v1777, %v1778
    %v1780 = vadd.f32 %v1692, %v1696
    %v1781 = vadd.f32 %v1780, %v1700
    %v1782 = vadd.f32 %v1781, %v1704
    %v1783 = vadd.f32 %v1782, %v1708
    %v1784 = vadd.f32 %v1783, %v1712
    %v1785 = vadd.f32 %v1784, %v1716
    %v1786 = vadd.f32 %v1785, %v1720
    %v1787 = vrot.slane %v1786, 4
    %v1788 = vadd.f32 %v1786, %v1787
    %v1789 = vrot.slane %v1788, 2
    %v1790 = vadd.f32 %v1788, %v1789
    %v1791 = vrot.slane %v1790, 1
    %v1792 = vadd.f32 %v1790, %v1791
    %v1793 = vadd.f32 %v1693, %v1697
    %v1794 = vadd.f32 %v1793, %v1701
    %v1795 = vadd.f32 %v1794, %v1705
    %v1796 = vadd.f32 %v1795, %v1709
    %v1797 = vadd.f32 %v1796, %v1713
    %v1798 = vadd.f32 %v1797, %v1717
    %v1799 = vadd.f32 %v1798, %v1721
    %v1800 = vrot.slane %v1799, 4
    %v1801 = vadd.f32 %v1799, %v1800
    %v1802 = vrot.slane %v1801, 2
    %v1803 = vadd.f32 %v1801, %v1802
    %v1804 = vrot.slane %v1803, 1
    %v1805 = vadd.f32 %v1803, %v1804
    %v1806 = vadd.f32 %v1722, %v1726
    %v1807 = vadd.f32 %v1806, %v1730
    %v1808 = vadd.f32 %v1807, %v1734
    %v1809 = vadd.f32 %v1808, %v1738
    %v1810 = vadd.f32 %v1809, %v1742
    %v1811 = vadd.f32 %v1810, %v1746
    %v1812 = vadd.f32 %v1811, %v1750
    %v1813 = vrot.slane %v1812, 4
    %v1814 = vadd.f32 %v1812, %v1813
    %v1815 = vrot.slane %v1814, 2
    %v1816 = vadd.f32 %v1814, %v1815
    %v1817 = vrot.slane %v1816, 1
    %v1818 = vadd.f32 %v1816, %v1817
    %v1819 = vadd.f32 %v1723, %v1727
    %v1820 = vadd.f32 %v1819, %v1731
    %v1821 = vadd.f32 %v1820, %v1735
    %v1822 = vadd.f32 %v1821, %v1739
    %v1823 = vadd.f32 %v1822, %v1743
    %v1824 = vadd.f32 %v1823, %v1747
    %v1825 = vadd.f32 %v1824, %v1751
    %v1826 = vrot.slane %v1825, 4
    %v1827 = vadd.f32 %v1825, %v1826
    %v1828 = vrot.slane %v1827, 2
    %v1829 = vadd.f32 %v1827, %v1828
    %v1830 = vrot.slane %v1829, 1
    %v1831 = vadd.f32 %v1829, %v1830
    %v1832 = vadd.f32 %v1724, %v1728
    %v1833 = vadd.f32 %v1832, %v1732
    %v1834 = vadd.f32 %v1833, %v1736
    %v1835 = vadd.f32 %v1834, %v1740
    %v1836 = vadd.f32 %v1835, %v1744
    %v1837 = vadd.f32 %v1836, %v1748
    %v1838 = vadd.f32 %v1837, %v1752
    %v1839 = vrot.slane %v1838, 4
    %v1840 = vadd.f32 %v1838, %v1839
    %v1841 = vrot.slane %v1840, 2
    %v1842 = vadd.f32 %v1840, %v1841
    %v1843 = vrot.slane %v1842, 1
    %v1844 = vadd.f32 %v1842, %v1843
    %v1845 = vadd.f32 %v1725, %v1729
    %v1846 = vadd.f32 %v1845, %v1733
    %v1847 = vadd.f32 %v1846, %v1737
    %v1848 = vadd.f32 %v1847, %v1741
    %v1849 = vadd.f32 %v1848, %v1745
    %v1850 = vadd.f32 %v1849, %v1749
    %v1851 = vadd.f32 %v1850, %v1753
    %v1852 = vrot.slane %v1851, 4
    %v1853 = vadd.f32 %v1851, %v1852
    %v1854 = vrot.slane %v1853, 2
    %v1855 = vadd.f32 %v1853, %v1854
    %v1856 = vrot.slane %v1855, 1
    %v1857 = vadd.f32 %v1855, %v1856
    %v1858 = vpack.c.bf16 %v1766, %v1766
    %v1859 = vpack.c.bf16 %v1779, %v1779
    %v1860 = vpack.c.bf16 %v1792, %v1792
    %v1861 = vpack.c.bf16 %v1805, %v1805
    %v1862 = vpack.c.bf16 %v1818, %v1818
    %v1863 = vpack.c.bf16 %v1831, %v1831
    %v1864 = vpack.c.bf16 %v1844, %v1844
    %v1865 = vpack.c.bf16 %v1857, %v1857
    %v1866 = vld [vmem:[%s7] sm:$0xf]
    %v1867 = vld [vmem:[%s7 + $0x4] sm:$0xf]
    %v1868 = vld [vmem:[%s7 + $0x8] sm:$0xf]
    %v1869 = vld [vmem:[%s7 + $0xc] sm:$0xf]
    %v1870 = vld [vmem:[%s7 + $0x10] sm:$0xf]
    %v1871 = vld [vmem:[%s7 + $0x14] sm:$0xf]
    %v1872 = vld [vmem:[%s7 + $0x18] sm:$0xf]
    %v1873 = vld [vmem:[%s7 + $0x1c] sm:$0xf]
    %v1874 = vld [vmem:[%s7 + $0x20] sm:$0xf]
    %v1875 = vld [vmem:[%s7 + $0x24] sm:$0xf]
    %v1876 = vld [vmem:[%s7 + $0x28] sm:$0xf]
    %v1877 = vld [vmem:[%s7 + $0x2c] sm:$0xf]
    %v1878 = vld [vmem:[%s7 + $0x30] sm:$0xf]
    %v1879 = vld [vmem:[%s7 + $0x34] sm:$0xf]
    %v1880 = vld [vmem:[%s7 + $0x38] sm:$0xf]
    %v1881 = vld [vmem:[%s7 + $0x3c] sm:$0xf]
    %v1882 = vld [vmem:[%s7 + $0x40] sm:$0xf]
    %v1883 = vld [vmem:[%s7 + $0x44] sm:$0xf]
    %v1884 = vld [vmem:[%s7 + $0x48] sm:$0xf]
    %v1885 = vld [vmem:[%s7 + $0x4c] sm:$0xf]
    %v1886 = vld [vmem:[%s7 + $0x50] sm:$0xf]
    %v1887 = vld [vmem:[%s7 + $0x54] sm:$0xf]
    %v1888 = vld [vmem:[%s7 + $0x58] sm:$0xf]
    %v1889 = vld [vmem:[%s7 + $0x5c] sm:$0xf]
    %v1890 = vld [vmem:[%s7 + $0x60] sm:$0xf]
    %v1891 = vld [vmem:[%s7 + $0x64] sm:$0xf]
    %v1892 = vld [vmem:[%s7 + $0x68] sm:$0xf]
    %v1893 = vld [vmem:[%s7 + $0x6c] sm:$0xf]
    %v1894 = vld [vmem:[%s7 + $0x70] sm:$0xf]
    %v1895 = vld [vmem:[%s7 + $0x74] sm:$0xf]
    %v1896 = vld [vmem:[%s7 + $0x78] sm:$0xf]
    %v1897 = vld [vmem:[%s7 + $0x7c] sm:$0xf]
    %v1898 = vld [vmem:[%s7 + $0x80] sm:$0xf]
    %v1899 = vld [vmem:[%s7 + $0x84] sm:$0xf]
    %v1900 = vld [vmem:[%s7 + $0x88] sm:$0xf]
    %v1901 = vld [vmem:[%s7 + $0x8c] sm:$0xf]
    %v1902 = vld [vmem:[%s7 + $0x90] sm:$0xf]
    %v1903 = vld [vmem:[%s7 + $0x94] sm:$0xf]
    %v1904 = vld [vmem:[%s7 + $0x98] sm:$0xf]
    %v1905 = vld [vmem:[%s7 + $0x9c] sm:$0xf]
    %v1906 = vld [vmem:[%s7 + $0xa0] sm:$0xf]
    %v1907 = vld [vmem:[%s7 + $0xa4] sm:$0xf]
    %v1908 = vld [vmem:[%s7 + $0xa8] sm:$0xf]
    %v1909 = vld [vmem:[%s7 + $0xac] sm:$0xf]
    %v1910 = vld [vmem:[%s7 + $0xb0] sm:$0xf]
    %v1911 = vld [vmem:[%s7 + $0xb4] sm:$0xf]
    %v1912 = vld [vmem:[%s7 + $0xb8] sm:$0xf]
    %v1913 = vld [vmem:[%s7 + $0xbc] sm:$0xf]
    %v1914 = vld [vmem:[%s7 + $0xc0] sm:$0xf]
    %v1915 = vld [vmem:[%s7 + $0xc4] sm:$0xf]
    %v1916 = vld [vmem:[%s7 + $0xc8] sm:$0xf]
    %v1917 = vld [vmem:[%s7 + $0xcc] sm:$0xf]
    %v1918 = vld [vmem:[%s7 + $0xd0] sm:$0xf]
    %v1919 = vld [vmem:[%s7 + $0xd4] sm:$0xf]
    %v1920 = vld [vmem:[%s7 + $0xd8] sm:$0xf]
    %v1921 = vld [vmem:[%s7 + $0xdc] sm:$0xf]
    %v1922 = vld [vmem:[%s7 + $0xe0] sm:$0xf]
    %v1923 = vld [vmem:[%s7 + $0xe4] sm:$0xf]
    %v1924 = vld [vmem:[%s7 + $0xe8] sm:$0xf]
    %v1925 = vld [vmem:[%s7 + $0xec] sm:$0xf]
    %v1926 = vld [vmem:[%s7 + $0xf0] sm:$0xf]
    %v1927 = vld [vmem:[%s7 + $0xf4] sm:$0xf]
    %v1928 = vld [vmem:[%s7 + $0xf8] sm:$0xf]
    %v1929 = vld [vmem:[%s7 + $0xfc] sm:$0xf]
    %v1930 = vld [vmem:[%s8 + $0x6] ss:$0 sm:$0xff]
    %v1939 = vunpack.c.l.b16 %v1858
    %v1940 = vunpack.c.l.b16 %v1859
    %v1941 = vunpack.c.l.b16 %v1860
    %v1942 = vunpack.c.l.b16 %v1861
    %v1943 = vunpack.c.l.b16 %v1862
    %v1944 = vunpack.c.l.b16 %v1863
    %v1945 = vunpack.c.l.b16 %v1864
    %v1946 = vunpack.c.l.b16 %v1865
    %vm1947 = vcmask 1041409
    %v1948 = vsel %vm1947, %v1943, %v1939
    %v1949 = vsel %vm1947, %v1944, %v1940
    %v1950 = vsel %vm1947, %v1945, %v1941
    %v1951 = vsel %vm1947, %v1946, %v1942
    %v1952 = vpack.c.b16 %v1948, %v1948
    %v1953 = vpack.c.b16 %v1949, %v1949
    %v1954 = vpack.c.b16 %v1950, %v1950
    %v1955 = vpack.c.b16 %v1951, %v1951
    %v2024 = vunpack.c.l.b16 %v1866
    %v2025 = vunpack.c.l.b16 %v1867
    %v2026 = vunpack.c.l.b16 %v1868
    %v2027 = vunpack.c.l.b16 %v1869
    %v2028 = vunpack.c.l.b16 %v1870
    %v2029 = vunpack.c.l.b16 %v1871
    %v2030 = vunpack.c.l.b16 %v1872
    %v2031 = vunpack.c.l.b16 %v1873
    %v2032 = vunpack.c.l.b16 %v1874
    %v2033 = vunpack.c.l.b16 %v1875
    %v2034 = vunpack.c.l.b16 %v1876
    %v2035 = vunpack.c.l.b16 %v1877
    %v2036 = vunpack.c.l.b16 %v1878
    %v2037 = vunpack.c.l.b16 %v1879
    %v2038 = vunpack.c.l.b16 %v1880
    %v2039 = vunpack.c.l.b16 %v1881
    %v2040 = vunpack.c.l.b16 %v1882
    %v2041 = vunpack.c.l.b16 %v1883
    %v2042 = vunpack.c.l.b16 %v1884
    %v2043 = vunpack.c.l.b16 %v1885
    %v2044 = vunpack.c.l.b16 %v1886
    %v2045 = vunpack.c.l.b16 %v1887
    %v2046 = vunpack.c.l.b16 %v1888
    %v2047 = vunpack.c.l.b16 %v1889
    %v2048 = vunpack.c.l.b16 %v1890
    %v2049 = vunpack.c.l.b16 %v1891
    %v2050 = vunpack.c.l.b16 %v1892
    %v2051 = vunpack.c.l.b16 %v1893
    %v2052 = vunpack.c.l.b16 %v1894
    %v2053 = vunpack.c.l.b16 %v1895
    %v2054 = vunpack.c.l.b16 %v1896
    %v2055 = vunpack.c.l.b16 %v1897
    %v2056 = vunpack.c.l.b16 %v1898
    %v2057 = vunpack.c.l.b16 %v1899
    %v2058 = vunpack.c.l.b16 %v1900
    %v2059 = vunpack.c.l.b16 %v1901
    %v2060 = vunpack.c.l.b16 %v1902
    %v2061 = vunpack.c.l.b16 %v1903
    %v2062 = vunpack.c.l.b16 %v1904
    %v2063 = vunpack.c.l.b16 %v1905
    %v2064 = vunpack.c.l.b16 %v1906
    %v2065 = vunpack.c.l.b16 %v1907
    %v2066 = vunpack.c.l.b16 %v1908
    %v2067 = vunpack.c.l.b16 %v1909
    %v2068 = vunpack.c.l.b16 %v1910
    %v2069 = vunpack.c.l.b16 %v1911
    %v2070 = vunpack.c.l.b16 %v1912
    %v2071 = vunpack.c.l.b16 %v1913
    %v2072 = vunpack.c.l.b16 %v1914
    %v2073 = vunpack.c.l.b16 %v1915
    %v2074 = vunpack.c.l.b16 %v1916
    %v2075 = vunpack.c.l.b16 %v1917
    %v2076 = vunpack.c.l.b16 %v1918
    %v2077 = vunpack.c.l.b16 %v1919
    %v2078 = vunpack.c.l.b16 %v1920
    %v2079 = vunpack.c.l.b16 %v1921
    %v2080 = vunpack.c.l.b16 %v1922
    %v2081 = vunpack.c.l.b16 %v1923
    %v2082 = vunpack.c.l.b16 %v1924
    %v2083 = vunpack.c.l.b16 %v1925
    %v2084 = vunpack.c.l.b16 %v1926
    %v2085 = vunpack.c.l.b16 %v1927
    %v2086 = vunpack.c.l.b16 %v1928
    %v2087 = vunpack.c.l.b16 %v1929
    %v2088 = vpack.c.b16 %v2025, %v2024
    %v2089 = vpack.c.b16 %v2027, %v2026
    %v2090 = vpack.c.b16 %v2029, %v2028
    %v2091 = vpack.c.b16 %v2031, %v2030
    %v2092 = vpack.c.b16 %v2033, %v2032
    %v2093 = vpack.c.b16 %v2035, %v2034
    %v2094 = vpack.c.b16 %v2037, %v2036
    %v2095 = vpack.c.b16 %v2039, %v2038
    %v2096 = vpack.c.b16 %v2041, %v2040
    %v2097 = vpack.c.b16 %v2043, %v2042
    %v2098 = vpack.c.b16 %v2045, %v2044
    %v2099 = vpack.c.b16 %v2047, %v2046
    %v2100 = vpack.c.b16 %v2049, %v2048
    %v2101 = vpack.c.b16 %v2051, %v2050
    %v2102 = vpack.c.b16 %v2053, %v2052
    %v2103 = vpack.c.b16 %v2055, %v2054
    %v2104 = vpack.c.b16 %v2057, %v2056
    %v2105 = vpack.c.b16 %v2059, %v2058
    %v2106 = vpack.c.b16 %v2061, %v2060
    %v2107 = vpack.c.b16 %v2063, %v2062
    %v2108 = vpack.c.b16 %v2065, %v2064
    %v2109 = vpack.c.b16 %v2067, %v2066
    %v2110 = vpack.c.b16 %v2069, %v2068
    %v2111 = vpack.c.b16 %v2071, %v2070
    %v2112 = vpack.c.b16 %v2073, %v2072
    %v2113 = vpack.c.b16 %v2075, %v2074
    %v2114 = vpack.c.b16 %v2077, %v2076
    %v2115 = vpack.c.b16 %v2079, %v2078
    %v2116 = vpack.c.b16 %v2081, %v2080
    %v2117 = vpack.c.b16 %v2083, %v2082
    %v2118 = vpack.c.b16 %v2085, %v2084
    %v2119 = vpack.c.b16 %v2087, %v2086
    %2152 = vmatprep.subr.bf16.mxu0 0
    %2153 = vmatpush1.bf16.msra.mxu0 %v2095
    %2154 = vmatprep.subr.bf16.mxu0 0
    %2155 = vmatpush1.bf16.msra.mxu0 %v2094
    %2156 = vmatprep.subr.bf16.mxu0 0
    %2157 = vmatpush1.bf16.msra.mxu0 %v2093
    %2158 = vmatprep.subr.bf16.mxu0 0
    %2159 = vmatpush1.bf16.msra.mxu0 %v2092
    %2160 = vmatprep.subr.bf16.mxu0 0
    %2161 = vmatpush1.bf16.msra.mxu0 %v2091
    %2162 = vmatprep.subr.bf16.mxu0 0
    %2163 = vmatpush1.bf16.msra.mxu0 %v2090
    %2164 = vmatprep.subr.bf16.mxu0 0
    %2165 = vmatpush1.bf16.msra.mxu0 %v2089
    %2166 = vmatprep.subr.bf16.mxu0 0
    %2167 = vmatpush1.bf16.msra.mxu0 %v2088
    %2168 = vmatprep.subr.bf16.mxu0 0
    %2169 = vmatpush2.bf16.msra.mxu0 %v2103
    %2170 = vmatprep.subr.bf16.mxu0 0
    %2171 = vmatpush2.bf16.msra.mxu0 %v2102
    %2172 = vmatprep.subr.bf16.mxu0 0
    %2173 = vmatpush2.bf16.msra.mxu0 %v2101
    %2174 = vmatprep.subr.bf16.mxu0 0
    %2175 = vmatpush2.bf16.msra.mxu0 %v2100
    %2176 = vmatprep.subr.bf16.mxu0 0
    %2177 = vmatpush2.bf16.msra.mxu0 %v2099
    %2178 = vmatprep.subr.bf16.mxu0 0
    %2179 = vmatpush2.bf16.msra.mxu0 %v2098
    %2180 = vmatprep.subr.bf16.mxu0 0
    %2181 = vmatpush2.bf16.msra.mxu0 %v2097
    %2182 = vmatprep.subr.bf16.mxu0 0
    %2183 = vmatpush2.bf16.msra.mxu0 %v2096
    %2184 = vmatprep.mubr.bf16.mxu0 %v1953
    %2185 = vmatmul.mubr.bf16.gmra.mxu0 %v1952
    %v2186 = vpop.f32.mrf.mxu0
    %v2187 = vadd.f32 %v1930, %v2186
    %v2188 = vpop.f32.mrf.mxu0
    %v2189 = vpop.f32.mrf.mxu0
    %v2190 = vpop.f32.mrf.mxu0
    %2191 = vdwg.mxu0
    %2192 = vmatprep.subr.bf16.mxu0 0
    %2193 = vmatpush1.bf16.msra.mxu0 %v2111
    %2194 = vmatprep.subr.bf16.mxu0 0
    %2195 = vmatpush1.bf16.msra.mxu0 %v2110
    %2196 = vmatprep.subr.bf16.mxu0 0
    %2197 = vmatpush1.bf16.msra.mxu0 %v2109
    %2198 = vmatprep.subr.bf16.mxu0 0
    %2199 = vmatpush1.bf16.msra.mxu0 %v2108
    %2200 = vmatprep.subr.bf16.mxu0 0
    %2201 = vmatpush1.bf16.msra.mxu0 %v2107
    %2202 = vmatprep.subr.bf16.mxu0 0
    %2203 = vmatpush1.bf16.msra.mxu0 %v2106
    %2204 = vmatprep.subr.bf16.mxu0 0
    %2205 = vmatpush1.bf16.msra.mxu0 %v2105
    %2206 = vmatprep.subr.bf16.mxu0 0
    %2207 = vmatpush1.bf16.msra.mxu0 %v2104
    %2208 = vmatprep.subr.bf16.mxu0 0
    %2209 = vmatpush2.bf16.msra.mxu0 %v2119
    %2210 = vmatprep.subr.bf16.mxu0 0
    %2211 = vmatpush2.bf16.msra.mxu0 %v2118
    %2212 = vmatprep.subr.bf16.mxu0 0
    %2213 = vmatpush2.bf16.msra.mxu0 %v2117
    %2214 = vmatprep.subr.bf16.mxu0 0
    %2215 = vmatpush2.bf16.msra.mxu0 %v2116
    %2216 = vmatprep.subr.bf16.mxu0 0
    %2217 = vmatpush2.bf16.msra.mxu0 %v2115
    %2218 = vmatprep.subr.bf16.mxu0 0
    %2219 = vmatpush2.bf16.msra.mxu0 %v2114
    %2220 = vmatprep.subr.bf16.mxu0 0
    %2221 = vmatpush2.bf16.msra.mxu0 %v2113
    %2222 = vmatprep.subr.bf16.mxu0 0
    %2223 = vmatpush2.bf16.msra.mxu0 %v2112
    %2224 = vmatprep.mubr.bf16.mxu0 %v1955
    %2225 = vmatmul.mubr.bf16.gmra.mxu0 %v1954
    %v2226 = vpop.f32.mrf.mxu0
    %v2227 = vadd.f32 %v2187, %v2226
    %v2228 = vpop.f32.mrf.mxu0
    %v2229 = vpop.f32.mrf.mxu0
    %v2230 = vpop.f32.mrf.mxu0
    %2231 = vdwg.mxu0
    %2232 = vst [vmem:[#allocation2] sm:$0x3] %v2227
    // Predicated region
    $region38: #{spec_encoder_forward.1} parent=1 // pred_check
      _
    $region39: #{spec_encoder_forward.1} parent=1 // pred_check_branch
      %2234 = sbr.rel (0) target = $region41
    $region40: #{spec_encoder_forward.1} parent=1 // pred_region
      %s2236 = ssub.s32 32, 32
      %2237 = vsyncadd [#allocation3], %s2236
      %s2239 = sshll.u32 [#allocation2], 4
      %s2240 = int_to_ptr.vmem [resolvable:$true] %s2239
      %2242 = dma.vmem_to_hbm [thread:$0]  %s2240, 32, %s9, [#allocation3]
    $region41: #{spec_encoder_forward.1} parent=1 // pred_fallthru
      _
    // Predicated region
    $region42: #{spec_encoder_forward.1} parent=1 // pred_check
      _
    $region43: #{spec_encoder_forward.1} parent=1 // pred_check_branch
      %2244 = sbr.rel (0) target = $region45
    $region44: #{spec_encoder_forward.1} parent=1 // pred_region
      %2245 = dma.done [#allocation3], 32
    $region45: #{spec_encoder_forward.1} parent=1 // pred_fallthru
      _
    %2246 = vsyncpa [#allocation3], 1

</llo_original>
